<compile_context>
chip_gen: v7x
topology: tpu7x:2x2x1
jax: 0.10.0
libtpu: 0.0.40
codegen_flags: <defaults>
</compile_context>

<pallas_src>
import functools

import jax
import jax.numpy as jnp
from jax import lax
from jax.experimental import pallas as pl
from jax.experimental.pallas import tpu as pltpu


def _bert_embeddings_kernel(ids_ref,      # SMEM (N,) int32   (scalar prefetch)
                            tt_ref,       # VMEM (rows, 1) int32
                            pos_ref,      # VMEM (rows, H)
                            type_ref,     # VMEM (T, H)
                            gamma_ref,    # VMEM (1, H)
                            beta_ref,     # VMEM (1, H)
                            word_ref,     # HBM/ANY (V, H)
                            out_ref,      # VMEM (rows, H)
                            wbuf,         # VMEM scratch (rows, H) - gathered word rows
                            sems,         # DMA semaphores (rows,)
                            *, eps):
    rows, _ = out_ref.shape
    n_types = type_ref.shape[0]
    base = pl.program_id(0) * rows

    # 1) Kick off the word-embedding row gather (HBM -> VMEM), one DMA per row,
    #    indices come straight from the scalar-prefetched ids in SMEM.
    for r in range(rows):
        tok = ids_ref[base + r]
        pltpu.make_async_copy(word_ref.at[pl.ds(tok, 1), :],
                              wbuf.at[pl.ds(r, 1), :],
                              sems.at[r]).start()

    # 2) Position embeddings: resident sequence-aligned slab, plain VPU add
    #    (replaces the old one-hot position matmul).
    x = pos_ref[...].astype(jnp.float32)

    # 3) Token-type embeddings: select over the tiny type table (VPU only,
    #    replaces the contraction-depth-2 MXU matmul).
    tt = tt_ref[...]  # (rows, 1) int32
    for t in range(n_types):
        sel = (tt == t).astype(jnp.float32)                       # (rows, 1)
        x = x + sel * type_ref[t:t + 1, :].astype(jnp.float32)    # bcast (1, H)

    # 4) Wait for the gathered word rows and add them (f32 accumulation).
    for r in range(rows):
        pltpu.make_async_copy(word_ref.at[pl.ds(0, 1), :],        # shape-only descriptor
                              wbuf.at[pl.ds(r, 1), :],
                              sems.at[r]).wait()
    x = x + wbuf[...].astype(jnp.float32)

    # 5) BERTLayerNorm (TF-style: epsilon inside the sqrt).
    u = jnp.mean(x, axis=-1, keepdims=True)
    xc = x - u
    s = jnp.mean(xc * xc, axis=-1, keepdims=True)
    y = xc * lax.rsqrt(s + eps)
    out = gamma_ref[...].astype(jnp.float32) * y + beta_ref[...].astype(jnp.float32)
    out_ref[...] = out.astype(out_ref.dtype)


def bert_embeddings(input_ids, token_type_ids, word_emb, pos_emb, type_emb,
                    gamma, beta, *, eps=1e-12, target_rows=256):
    B, S = input_ids.shape
    V, H = word_emb.shape
    P = pos_emb.shape[0]
    T = type_emb.shape[0]
    assert S <= P, "sequence length exceeds max_position_embeddings"
    N = B * S

    # Rows per grid step: a multiple of S (so positions are tile-invariant),
    # as close to target_rows as possible, and dividing B*S exactly.
    k = max(1, min(B, max(1, target_rows // S)))
    while B % k != 0:
        k -= 1
    rows = k * S
    assert N % rows == 0
    assert rows % 8 == 0 or rows == N, "rows-per-tile must be sublane aligned"

    ids_flat = input_ids.reshape(N).astype(jnp.int32)         # scalar-prefetched -> SMEM
    tt_flat = token_type_ids.reshape(N, 1).astype(jnp.int32)
    # Positions are (flat_row % S); a tile spanning k whole sequences just needs
    # pos_emb[:S] repeated k times (tiny, one-time host-side prep).
    pos_slab = jnp.tile(pos_emb[:S], (k, 1))
    gamma2 = gamma.reshape(1, H)
    beta2 = beta.reshape(1, H)

    grid = (N // rows,)
    kernel = functools.partial(_bert_embeddings_kernel, eps=eps)
    # NOTE: for the toy H=32 the output block is not lane-dense (<128 lanes);
    # real BERT (H=768) stores unmasked full-lane slabs.
    out = pl.pallas_call(
        kernel,
        out_shape=jax.ShapeDtypeStruct((N, H), jnp.float32),
        grid_spec=pltpu.PrefetchScalarGridSpec(
            num_scalar_prefetch=1,              # ids -> SMEM, drives the DMA gather
            grid=grid,
            in_specs=[
                pl.BlockSpec((rows, 1), lambda i, ids: (i, 0)),   # token_type_ids
                pl.BlockSpec((rows, H), lambda i, ids: (0, 0)),   # position slab (resident)
                pl.BlockSpec((T, H), lambda i, ids: (0, 0)),      # token-type table (resident)
                pl.BlockSpec((1, H), lambda i, ids: (0, 0)),      # gamma
                pl.BlockSpec((1, H), lambda i, ids: (0, 0)),      # beta
                pl.BlockSpec(memory_space=pl.ANY),                # word table stays in HBM
            ],
            out_specs=pl.BlockSpec((rows, H), lambda i, ids: (i, 0)),
            scratch_shapes=[
                pltpu.VMEM((rows, H), word_emb.dtype),            # gathered word rows
                pltpu.SemaphoreType.DMA((rows,)),                 # one sem per row DMA
            ],
        ),
        compiler_params=pltpu.CompilerParams(
            dimension_semantics=("parallel",),
            vmem_limit_bytes=32 * 1024 * 1024,
        ),
    )(ids_flat, tt_flat, pos_slab, type_emb, gamma2, beta2, word_emb)
    return out.reshape(B, S, H)


def _reference(input_ids, token_type_ids, word_emb, pos_emb, type_emb, gamma, beta, eps=1e-12):
    B, S = input_ids.shape
    words = word_emb[input_ids]
    pos_ids = jnp.broadcast_to(jnp.arange(S)[None, :], (B, S))
    pos = pos_emb[pos_ids]
    types = type_emb[token_type_ids]
    x = words + pos + types
    u = jnp.mean(x, axis=-1, keepdims=True)
    s = jnp.mean((x - u) ** 2, axis=-1, keepdims=True)
    y = (x - u) / jnp.sqrt(s + eps)
    return gamma * y + beta


if __name__ == "__main__":
    # Small shapes consistent with a tiny BERT config.
    B, S, H = 2, 8, 32
    VOCAB, MAX_POS, N_TYPES = 128, 16, 2

    key = jax.random.PRNGKey(0)
    k_ids, k_tt, k_w, k_p, k_t = jax.random.split(key, 5)

    input_ids = jax.random.randint(k_ids, (B, S), 0, VOCAB, dtype=jnp.int32)
    token_type_ids = jax.random.randint(k_tt, (B, S), 0, N_TYPES, dtype=jnp.int32)

    # Deterministic parameter init (shapes from BERTEmbeddings.__init__).
    word_emb = jax.random.normal(k_w, (VOCAB, H), dtype=jnp.float32) * 0.02
    pos_emb = jax.random.normal(k_p, (MAX_POS, H), dtype=jnp.float32) * 0.02
    type_emb = jax.random.normal(k_t, (N_TYPES, H), dtype=jnp.float32) * 0.02
    gamma = jnp.ones((H,), dtype=jnp.float32)   # BERTLayerNorm.gamma
    beta = jnp.zeros((H,), dtype=jnp.float32)   # BERTLayerNorm.beta

    out = bert_embeddings(input_ids, token_type_ids, word_emb, pos_emb,
                          type_emb, gamma, beta)
    out = jax.block_until_ready(out)

    ref = _reference(input_ids, token_type_ids, word_emb, pos_emb, type_emb, gamma, beta)
    assert out.shape == (B, S, H)
    assert jnp.allclose(out, ref, atol=1e-5, rtol=1e-5)

    print("KERNEL_OK")
</pallas_src>

<mosaic_0001>
module attributes {stable_mosaic.version = 11 : i64} {
  func.func @_bert_embeddings_kernel(%arg0: i32, %arg1: memref<16xi32, #tpu.memory_space<smem>>, %arg2: memref<16x1xi32, #tpu.memory_space<vmem>>, %arg3: memref<16x32xf32, #tpu.memory_space<vmem>>, %arg4: memref<2x32xf32, #tpu.memory_space<vmem>>, %arg5: memref<1x32xf32, #tpu.memory_space<vmem>>, %arg6: memref<1x32xf32, #tpu.memory_space<vmem>>, %arg7: memref<128x32xf32, #tpu.memory_space<any>>, %arg8: memref<16x32xf32, #tpu.memory_space<vmem>>, %arg9: memref<16x32xf32, #tpu.memory_space<vmem>>, %arg10: memref<16x!tpu.dma_semaphore, #tpu.memory_space<semaphore_mem>>) attributes {dimension_semantics = [#tpu.dimension_semantics<parallel>], iteration_bounds = array<i64: 1>, scalar_prefetch = 1 : i64, scratch_operands = 2 : i64, tpu.core_type = #tpu.core_type<tc>, window_params = [{transform_indices = @transform_0, window_bounds = array<i64: 16, 1>}, {pipeline_mode = #tpu.pipeline_mode<synchronous>, transform_indices = @transform_1, window_bounds = array<i64: 16, 32>}, {pipeline_mode = #tpu.pipeline_mode<synchronous>, transform_indices = @transform_2, window_bounds = array<i64: 2, 32>}, {pipeline_mode = #tpu.pipeline_mode<synchronous>, transform_indices = @transform_3, window_bounds = array<i64: 1, 32>}, {pipeline_mode = #tpu.pipeline_mode<synchronous>, transform_indices = @transform_4, window_bounds = array<i64: 1, 32>}, {}, {transform_indices = @transform_6, window_bounds = array<i64: 16, 32>}]} {
    %c16_i32 = arith.constant 16 : i32
    %0 = arith.muli %arg0, %c16_i32 : i32
    %c0_i32 = arith.constant 0 : i32
    %1 = arith.addi %0, %c0_i32 : i32
    %2 = arith.index_cast %1 : i32 to index
    %3 = memref.load %arg1[%2] : memref<16xi32, #tpu.memory_space<smem>>
    %c0_i32_0 = arith.constant 0 : i32
    %c0_i32_1 = arith.constant 0 : i32
    %4 = tpu.memref_slice %arg7[%3, %c0_i32_1] : memref<128x32xf32, #tpu.memory_space<any>> -> memref<1x32xf32, #tpu.memory_space<any>>
    %c0_i32_2 = arith.constant 0 : i32
    %c0_i32_3 = arith.constant 0 : i32
    %5 = tpu.memref_slice %arg9[%c0_i32_2, %c0_i32_3] : memref<16x32xf32, #tpu.memory_space<vmem>> -> memref<1x32xf32, #tpu.memory_space<vmem>>
    %6 = tpu.memref_slice %arg10[%c0_i32_0] : memref<16x!tpu.dma_semaphore, #tpu.memory_space<semaphore_mem>> -> memref<1x!tpu.dma_semaphore, #tpu.memory_space<semaphore_mem>>
    %7 = tpu.memref_squeeze %6 : memref<1x!tpu.dma_semaphore, #tpu.memory_space<semaphore_mem>> -> memref<!tpu.dma_semaphore, #tpu.memory_space<semaphore_mem>>
    tpu.enqueue_dma source(%4 : memref<1x32xf32, #tpu.memory_space<any>>) target(%5 : memref<1x32xf32, #tpu.memory_space<vmem>>) target_semaphore(%7 : memref<!tpu.dma_semaphore, #tpu.memory_space<semaphore_mem>>)
    %c1_i32 = arith.constant 1 : i32
    %8 = arith.addi %0, %c1_i32 : i32
    %9 = arith.index_cast %8 : i32 to index
    %10 = memref.load %arg1[%9] : memref<16xi32, #tpu.memory_space<smem>>
    %c1_i32_4 = arith.constant 1 : i32
    %c0_i32_5 = arith.constant 0 : i32
    %11 = tpu.memref_slice %arg7[%10, %c0_i32_5] : memref<128x32xf32, #tpu.memory_space<any>> -> memref<1x32xf32, #tpu.memory_space<any>>
    %c1_i32_6 = arith.constant 1 : i32
    %c0_i32_7 = arith.constant 0 : i32
    %12 = tpu.memref_slice %arg9[%c1_i32_6, %c0_i32_7] : memref<16x32xf32, #tpu.memory_space<vmem>> -> memref<1x32xf32, #tpu.memory_space<vmem>>
    %13 = tpu.memref_slice %arg10[%c1_i32_4] : memref<16x!tpu.dma_semaphore, #tpu.memory_space<semaphore_mem>> -> memref<1x!tpu.dma_semaphore, #tpu.memory_space<semaphore_mem>>
    %14 = tpu.memref_squeeze %13 : memref<1x!tpu.dma_semaphore, #tpu.memory_space<semaphore_mem>> -> memref<!tpu.dma_semaphore, #tpu.memory_space<semaphore_mem>>
    tpu.enqueue_dma source(%11 : memref<1x32xf32, #tpu.memory_space<any>>) target(%12 : memref<1x32xf32, #tpu.memory_space<vmem>>) target_semaphore(%14 : memref<!tpu.dma_semaphore, #tpu.memory_space<semaphore_mem>>)
    %c2_i32 = arith.constant 2 : i32
    %15 = arith.addi %0, %c2_i32 : i32
    %16 = arith.index_cast %15 : i32 to index
    %17 = memref.load %arg1[%16] : memref<16xi32, #tpu.memory_space<smem>>
    %c2_i32_8 = arith.constant 2 : i32
    %c0_i32_9 = arith.constant 0 : i32
    %18 = tpu.memref_slice %arg7[%17, %c0_i32_9] : memref<128x32xf32, #tpu.memory_space<any>> -> memref<1x32xf32, #tpu.memory_space<any>>
    %c2_i32_10 = arith.constant 2 : i32
    %c0_i32_11 = arith.constant 0 : i32
    %19 = tpu.memref_slice %arg9[%c2_i32_10, %c0_i32_11] : memref<16x32xf32, #tpu.memory_space<vmem>> -> memref<1x32xf32, #tpu.memory_space<vmem>>
    %20 = tpu.memref_slice %arg10[%c2_i32_8] : memref<16x!tpu.dma_semaphore, #tpu.memory_space<semaphore_mem>> -> memref<1x!tpu.dma_semaphore, #tpu.memory_space<semaphore_mem>>
    %21 = tpu.memref_squeeze %20 : memref<1x!tpu.dma_semaphore, #tpu.memory_space<semaphore_mem>> -> memref<!tpu.dma_semaphore, #tpu.memory_space<semaphore_mem>>
    tpu.enqueue_dma source(%18 : memref<1x32xf32, #tpu.memory_space<any>>) target(%19 : memref<1x32xf32, #tpu.memory_space<vmem>>) target_semaphore(%21 : memref<!tpu.dma_semaphore, #tpu.memory_space<semaphore_mem>>)
    %c3_i32 = arith.constant 3 : i32
    %22 = arith.addi %0, %c3_i32 : i32
    %23 = arith.index_cast %22 : i32 to index
    %24 = memref.load %arg1[%23] : memref<16xi32, #tpu.memory_space<smem>>
    %c3_i32_12 = arith.constant 3 : i32
    %c0_i32_13 = arith.constant 0 : i32
    %25 = tpu.memref_slice %arg7[%24, %c0_i32_13] : memref<128x32xf32, #tpu.memory_space<any>> -> memref<1x32xf32, #tpu.memory_space<any>>
    %c3_i32_14 = arith.constant 3 : i32
    %c0_i32_15 = arith.constant 0 : i32
    %26 = tpu.memref_slice %arg9[%c3_i32_14, %c0_i32_15] : memref<16x32xf32, #tpu.memory_space<vmem>> -> memref<1x32xf32, #tpu.memory_space<vmem>>
    %27 = tpu.memref_slice %arg10[%c3_i32_12] : memref<16x!tpu.dma_semaphore, #tpu.memory_space<semaphore_mem>> -> memref<1x!tpu.dma_semaphore, #tpu.memory_space<semaphore_mem>>
    %28 = tpu.memref_squeeze %27 : memref<1x!tpu.dma_semaphore, #tpu.memory_space<semaphore_mem>> -> memref<!tpu.dma_semaphore, #tpu.memory_space<semaphore_mem>>
    tpu.enqueue_dma source(%25 : memref<1x32xf32, #tpu.memory_space<any>>) target(%26 : memref<1x32xf32, #tpu.memory_space<vmem>>) target_semaphore(%28 : memref<!tpu.dma_semaphore, #tpu.memory_space<semaphore_mem>>)
    %c4_i32 = arith.constant 4 : i32
    %29 = arith.addi %0, %c4_i32 : i32
    %30 = arith.index_cast %29 : i32 to index
    %31 = memref.load %arg1[%30] : memref<16xi32, #tpu.memory_space<smem>>
    %c4_i32_16 = arith.constant 4 : i32
    %c0_i32_17 = arith.constant 0 : i32
    %32 = tpu.memref_slice %arg7[%31, %c0_i32_17] : memref<128x32xf32, #tpu.memory_space<any>> -> memref<1x32xf32, #tpu.memory_space<any>>
    %c4_i32_18 = arith.constant 4 : i32
    %c0_i32_19 = arith.constant 0 : i32
    %33 = tpu.memref_slice %arg9[%c4_i32_18, %c0_i32_19] : memref<16x32xf32, #tpu.memory_space<vmem>> -> memref<1x32xf32, #tpu.memory_space<vmem>>
    %34 = tpu.memref_slice %arg10[%c4_i32_16] : memref<16x!tpu.dma_semaphore, #tpu.memory_space<semaphore_mem>> -> memref<1x!tpu.dma_semaphore, #tpu.memory_space<semaphore_mem>>
    %35 = tpu.memref_squeeze %34 : memref<1x!tpu.dma_semaphore, #tpu.memory_space<semaphore_mem>> -> memref<!tpu.dma_semaphore, #tpu.memory_space<semaphore_mem>>
    tpu.enqueue_dma source(%32 : memref<1x32xf32, #tpu.memory_space<any>>) target(%33 : memref<1x32xf32, #tpu.memory_space<vmem>>) target_semaphore(%35 : memref<!tpu.dma_semaphore, #tpu.memory_space<semaphore_mem>>)
    %c5_i32 = arith.constant 5 : i32
    %36 = arith.addi %0, %c5_i32 : i32
    %37 = arith.index_cast %36 : i32 to index
    %38 = memref.load %arg1[%37] : memref<16xi32, #tpu.memory_space<smem>>
    %c5_i32_20 = arith.constant 5 : i32
    %c0_i32_21 = arith.constant 0 : i32
    %39 = tpu.memref_slice %arg7[%38, %c0_i32_21] : memref<128x32xf32, #tpu.memory_space<any>> -> memref<1x32xf32, #tpu.memory_space<any>>
    %c5_i32_22 = arith.constant 5 : i32
    %c0_i32_23 = arith.constant 0 : i32
    %40 = tpu.memref_slice %arg9[%c5_i32_22, %c0_i32_23] : memref<16x32xf32, #tpu.memory_space<vmem>> -> memref<1x32xf32, #tpu.memory_space<vmem>>
    %41 = tpu.memref_slice %arg10[%c5_i32_20] : memref<16x!tpu.dma_semaphore, #tpu.memory_space<semaphore_mem>> -> memref<1x!tpu.dma_semaphore, #tpu.memory_space<semaphore_mem>>
    %42 = tpu.memref_squeeze %41 : memref<1x!tpu.dma_semaphore, #tpu.memory_space<semaphore_mem>> -> memref<!tpu.dma_semaphore, #tpu.memory_space<semaphore_mem>>
    tpu.enqueue_dma source(%39 : memref<1x32xf32, #tpu.memory_space<any>>) target(%40 : memref<1x32xf32, #tpu.memory_space<vmem>>) target_semaphore(%42 : memref<!tpu.dma_semaphore, #tpu.memory_space<semaphore_mem>>)
    %c6_i32 = arith.constant 6 : i32
    %43 = arith.addi %0, %c6_i32 : i32
    %44 = arith.index_cast %43 : i32 to index
    %45 = memref.load %arg1[%44] : memref<16xi32, #tpu.memory_space<smem>>
    %c6_i32_24 = arith.constant 6 : i32
    %c0_i32_25 = arith.constant 0 : i32
    %46 = tpu.memref_slice %arg7[%45, %c0_i32_25] : memref<128x32xf32, #tpu.memory_space<any>> -> memref<1x32xf32, #tpu.memory_space<any>>
    %c6_i32_26 = arith.constant 6 : i32
    %c0_i32_27 = arith.constant 0 : i32
    %47 = tpu.memref_slice %arg9[%c6_i32_26, %c0_i32_27] : memref<16x32xf32, #tpu.memory_space<vmem>> -> memref<1x32xf32, #tpu.memory_space<vmem>>
    %48 = tpu.memref_slice %arg10[%c6_i32_24] : memref<16x!tpu.dma_semaphore, #tpu.memory_space<semaphore_mem>> -> memref<1x!tpu.dma_semaphore, #tpu.memory_space<semaphore_mem>>
    %49 = tpu.memref_squeeze %48 : memref<1x!tpu.dma_semaphore, #tpu.memory_space<semaphore_mem>> -> memref<!tpu.dma_semaphore, #tpu.memory_space<semaphore_mem>>
    tpu.enqueue_dma source(%46 : memref<1x32xf32, #tpu.memory_space<any>>) target(%47 : memref<1x32xf32, #tpu.memory_space<vmem>>) target_semaphore(%49 : memref<!tpu.dma_semaphore, #tpu.memory_space<semaphore_mem>>)
    %c7_i32 = arith.constant 7 : i32
    %50 = arith.addi %0, %c7_i32 : i32
    %51 = arith.index_cast %50 : i32 to index
    %52 = memref.load %arg1[%51] : memref<16xi32, #tpu.memory_space<smem>>
    %c7_i32_28 = arith.constant 7 : i32
    %c0_i32_29 = arith.constant 0 : i32
    %53 = tpu.memref_slice %arg7[%52, %c0_i32_29] : memref<128x32xf32, #tpu.memory_space<any>> -> memref<1x32xf32, #tpu.memory_space<any>>
    %c7_i32_30 = arith.constant 7 : i32
    %c0_i32_31 = arith.constant 0 : i32
    %54 = tpu.memref_slice %arg9[%c7_i32_30, %c0_i32_31] : memref<16x32xf32, #tpu.memory_space<vmem>> -> memref<1x32xf32, #tpu.memory_space<vmem>>
    %55 = tpu.memref_slice %arg10[%c7_i32_28] : memref<16x!tpu.dma_semaphore, #tpu.memory_space<semaphore_mem>> -> memref<1x!tpu.dma_semaphore, #tpu.memory_space<semaphore_mem>>
    %56 = tpu.memref_squeeze %55 : memref<1x!tpu.dma_semaphore, #tpu.memory_space<semaphore_mem>> -> memref<!tpu.dma_semaphore, #tpu.memory_space<semaphore_mem>>
    tpu.enqueue_dma source(%53 : memref<1x32xf32, #tpu.memory_space<any>>) target(%54 : memref<1x32xf32, #tpu.memory_space<vmem>>) target_semaphore(%56 : memref<!tpu.dma_semaphore, #tpu.memory_space<semaphore_mem>>)
    %c8_i32 = arith.constant 8 : i32
    %57 = arith.addi %0, %c8_i32 : i32
    %58 = arith.index_cast %57 : i32 to index
    %59 = memref.load %arg1[%58] : memref<16xi32, #tpu.memory_space<smem>>
    %c8_i32_32 = arith.constant 8 : i32
    %c0_i32_33 = arith.constant 0 : i32
    %60 = tpu.memref_slice %arg7[%59, %c0_i32_33] : memref<128x32xf32, #tpu.memory_space<any>> -> memref<1x32xf32, #tpu.memory_space<any>>
    %c8_i32_34 = arith.constant 8 : i32
    %c0_i32_35 = arith.constant 0 : i32
    %61 = tpu.memref_slice %arg9[%c8_i32_34, %c0_i32_35] : memref<16x32xf32, #tpu.memory_space<vmem>> -> memref<1x32xf32, #tpu.memory_space<vmem>>
    %62 = tpu.memref_slice %arg10[%c8_i32_32] : memref<16x!tpu.dma_semaphore, #tpu.memory_space<semaphore_mem>> -> memref<1x!tpu.dma_semaphore, #tpu.memory_space<semaphore_mem>>
    %63 = tpu.memref_squeeze %62 : memref<1x!tpu.dma_semaphore, #tpu.memory_space<semaphore_mem>> -> memref<!tpu.dma_semaphore, #tpu.memory_space<semaphore_mem>>
    tpu.enqueue_dma source(%60 : memref<1x32xf32, #tpu.memory_space<any>>) target(%61 : memref<1x32xf32, #tpu.memory_space<vmem>>) target_semaphore(%63 : memref<!tpu.dma_semaphore, #tpu.memory_space<semaphore_mem>>)
    %c9_i32 = arith.constant 9 : i32
    %64 = arith.addi %0, %c9_i32 : i32
    %65 = arith.index_cast %64 : i32 to index
    %66 = memref.load %arg1[%65] : memref<16xi32, #tpu.memory_space<smem>>
    %c9_i32_36 = arith.constant 9 : i32
    %c0_i32_37 = arith.constant 0 : i32
    %67 = tpu.memref_slice %arg7[%66, %c0_i32_37] : memref<128x32xf32, #tpu.memory_space<any>> -> memref<1x32xf32, #tpu.memory_space<any>>
    %c9_i32_38 = arith.constant 9 : i32
    %c0_i32_39 = arith.constant 0 : i32
    %68 = tpu.memref_slice %arg9[%c9_i32_38, %c0_i32_39] : memref<16x32xf32, #tpu.memory_space<vmem>> -> memref<1x32xf32, #tpu.memory_space<vmem>>
    %69 = tpu.memref_slice %arg10[%c9_i32_36] : memref<16x!tpu.dma_semaphore, #tpu.memory_space<semaphore_mem>> -> memref<1x!tpu.dma_semaphore, #tpu.memory_space<semaphore_mem>>
    %70 = tpu.memref_squeeze %69 : memref<1x!tpu.dma_semaphore, #tpu.memory_space<semaphore_mem>> -> memref<!tpu.dma_semaphore, #tpu.memory_space<semaphore_mem>>
    tpu.enqueue_dma source(%67 : memref<1x32xf32, #tpu.memory_space<any>>) target(%68 : memref<1x32xf32, #tpu.memory_space<vmem>>) target_semaphore(%70 : memref<!tpu.dma_semaphore, #tpu.memory_space<semaphore_mem>>)
    %c10_i32 = arith.constant 10 : i32
    %71 = arith.addi %0, %c10_i32 : i32
    %72 = arith.index_cast %71 : i32 to index
    %73 = memref.load %arg1[%72] : memref<16xi32, #tpu.memory_space<smem>>
    %c10_i32_40 = arith.constant 10 : i32
    %c0_i32_41 = arith.constant 0 : i32
    %74 = tpu.memref_slice %arg7[%73, %c0_i32_41] : memref<128x32xf32, #tpu.memory_space<any>> -> memref<1x32xf32, #tpu.memory_space<any>>
    %c10_i32_42 = arith.constant 10 : i32
    %c0_i32_43 = arith.constant 0 : i32
    %75 = tpu.memref_slice %arg9[%c10_i32_42, %c0_i32_43] : memref<16x32xf32, #tpu.memory_space<vmem>> -> memref<1x32xf32, #tpu.memory_space<vmem>>
    %76 = tpu.memref_slice %arg10[%c10_i32_40] : memref<16x!tpu.dma_semaphore, #tpu.memory_space<semaphore_mem>> -> memref<1x!tpu.dma_semaphore, #tpu.memory_space<semaphore_mem>>
    %77 = tpu.memref_squeeze %76 : memref<1x!tpu.dma_semaphore, #tpu.memory_space<semaphore_mem>> -> memref<!tpu.dma_semaphore, #tpu.memory_space<semaphore_mem>>
    tpu.enqueue_dma source(%74 : memref<1x32xf32, #tpu.memory_space<any>>) target(%75 : memref<1x32xf32, #tpu.memory_space<vmem>>) target_semaphore(%77 : memref<!tpu.dma_semaphore, #tpu.memory_space<semaphore_mem>>)
    %c11_i32 = arith.constant 11 : i32
    %78 = arith.addi %0, %c11_i32 : i32
    %79 = arith.index_cast %78 : i32 to index
    %80 = memref.load %arg1[%79] : memref<16xi32, #tpu.memory_space<smem>>
    %c11_i32_44 = arith.constant 11 : i32
    %c0_i32_45 = arith.constant 0 : i32
    %81 = tpu.memref_slice %arg7[%80, %c0_i32_45] : memref<128x32xf32, #tpu.memory_space<any>> -> memref<1x32xf32, #tpu.memory_space<any>>
    %c11_i32_46 = arith.constant 11 : i32
    %c0_i32_47 = arith.constant 0 : i32
    %82 = tpu.memref_slice %arg9[%c11_i32_46, %c0_i32_47] : memref<16x32xf32, #tpu.memory_space<vmem>> -> memref<1x32xf32, #tpu.memory_space<vmem>>
    %83 = tpu.memref_slice %arg10[%c11_i32_44] : memref<16x!tpu.dma_semaphore, #tpu.memory_space<semaphore_mem>> -> memref<1x!tpu.dma_semaphore, #tpu.memory_space<semaphore_mem>>
    %84 = tpu.memref_squeeze %83 : memref<1x!tpu.dma_semaphore, #tpu.memory_space<semaphore_mem>> -> memref<!tpu.dma_semaphore, #tpu.memory_space<semaphore_mem>>
    tpu.enqueue_dma source(%81 : memref<1x32xf32, #tpu.memory_space<any>>) target(%82 : memref<1x32xf32, #tpu.memory_space<vmem>>) target_semaphore(%84 : memref<!tpu.dma_semaphore, #tpu.memory_space<semaphore_mem>>)
    %c12_i32 = arith.constant 12 : i32
    %85 = arith.addi %0, %c12_i32 : i32
    %86 = arith.index_cast %85 : i32 to index
    %87 = memref.load %arg1[%86] : memref<16xi32, #tpu.memory_space<smem>>
    %c12_i32_48 = arith.constant 12 : i32
    %c0_i32_49 = arith.constant 0 : i32
    %88 = tpu.memref_slice %arg7[%87, %c0_i32_49] : memref<128x32xf32, #tpu.memory_space<any>> -> memref<1x32xf32, #tpu.memory_space<any>>
    %c12_i32_50 = arith.constant 12 : i32
    %c0_i32_51 = arith.constant 0 : i32
    %89 = tpu.memref_slice %arg9[%c12_i32_50, %c0_i32_51] : memref<16x32xf32, #tpu.memory_space<vmem>> -> memref<1x32xf32, #tpu.memory_space<vmem>>
    %90 = tpu.memref_slice %arg10[%c12_i32_48] : memref<16x!tpu.dma_semaphore, #tpu.memory_space<semaphore_mem>> -> memref<1x!tpu.dma_semaphore, #tpu.memory_space<semaphore_mem>>
    %91 = tpu.memref_squeeze %90 : memref<1x!tpu.dma_semaphore, #tpu.memory_space<semaphore_mem>> -> memref<!tpu.dma_semaphore, #tpu.memory_space<semaphore_mem>>
    tpu.enqueue_dma source(%88 : memref<1x32xf32, #tpu.memory_space<any>>) target(%89 : memref<1x32xf32, #tpu.memory_space<vmem>>) target_semaphore(%91 : memref<!tpu.dma_semaphore, #tpu.memory_space<semaphore_mem>>)
    %c13_i32 = arith.constant 13 : i32
    %92 = arith.addi %0, %c13_i32 : i32
    %93 = arith.index_cast %92 : i32 to index
    %94 = memref.load %arg1[%93] : memref<16xi32, #tpu.memory_space<smem>>
    %c13_i32_52 = arith.constant 13 : i32
    %c0_i32_53 = arith.constant 0 : i32
    %95 = tpu.memref_slice %arg7[%94, %c0_i32_53] : memref<128x32xf32, #tpu.memory_space<any>> -> memref<1x32xf32, #tpu.memory_space<any>>
    %c13_i32_54 = arith.constant 13 : i32
    %c0_i32_55 = arith.constant 0 : i32
    %96 = tpu.memref_slice %arg9[%c13_i32_54, %c0_i32_55] : memref<16x32xf32, #tpu.memory_space<vmem>> -> memref<1x32xf32, #tpu.memory_space<vmem>>
    %97 = tpu.memref_slice %arg10[%c13_i32_52] : memref<16x!tpu.dma_semaphore, #tpu.memory_space<semaphore_mem>> -> memref<1x!tpu.dma_semaphore, #tpu.memory_space<semaphore_mem>>
    %98 = tpu.memref_squeeze %97 : memref<1x!tpu.dma_semaphore, #tpu.memory_space<semaphore_mem>> -> memref<!tpu.dma_semaphore, #tpu.memory_space<semaphore_mem>>
    tpu.enqueue_dma source(%95 : memref<1x32xf32, #tpu.memory_space<any>>) target(%96 : memref<1x32xf32, #tpu.memory_space<vmem>>) target_semaphore(%98 : memref<!tpu.dma_semaphore, #tpu.memory_space<semaphore_mem>>)
    %c14_i32 = arith.constant 14 : i32
    %99 = arith.addi %0, %c14_i32 : i32
    %100 = arith.index_cast %99 : i32 to index
    %101 = memref.load %arg1[%100] : memref<16xi32, #tpu.memory_space<smem>>
    %c14_i32_56 = arith.constant 14 : i32
    %c0_i32_57 = arith.constant 0 : i32
    %102 = tpu.memref_slice %arg7[%101, %c0_i32_57] : memref<128x32xf32, #tpu.memory_space<any>> -> memref<1x32xf32, #tpu.memory_space<any>>
    %c14_i32_58 = arith.constant 14 : i32
    %c0_i32_59 = arith.constant 0 : i32
    %103 = tpu.memref_slice %arg9[%c14_i32_58, %c0_i32_59] : memref<16x32xf32, #tpu.memory_space<vmem>> -> memref<1x32xf32, #tpu.memory_space<vmem>>
    %104 = tpu.memref_slice %arg10[%c14_i32_56] : memref<16x!tpu.dma_semaphore, #tpu.memory_space<semaphore_mem>> -> memref<1x!tpu.dma_semaphore, #tpu.memory_space<semaphore_mem>>
    %105 = tpu.memref_squeeze %104 : memref<1x!tpu.dma_semaphore, #tpu.memory_space<semaphore_mem>> -> memref<!tpu.dma_semaphore, #tpu.memory_space<semaphore_mem>>
    tpu.enqueue_dma source(%102 : memref<1x32xf32, #tpu.memory_space<any>>) target(%103 : memref<1x32xf32, #tpu.memory_space<vmem>>) target_semaphore(%105 : memref<!tpu.dma_semaphore, #tpu.memory_space<semaphore_mem>>)
    %c15_i32 = arith.constant 15 : i32
    %106 = arith.addi %0, %c15_i32 : i32
    %107 = arith.index_cast %106 : i32 to index
    %108 = memref.load %arg1[%107] : memref<16xi32, #tpu.memory_space<smem>>
    %c15_i32_60 = arith.constant 15 : i32
    %c0_i32_61 = arith.constant 0 : i32
    %109 = tpu.memref_slice %arg7[%108, %c0_i32_61] : memref<128x32xf32, #tpu.memory_space<any>> -> memref<1x32xf32, #tpu.memory_space<any>>
    %c15_i32_62 = arith.constant 15 : i32
    %c0_i32_63 = arith.constant 0 : i32
    %110 = tpu.memref_slice %arg9[%c15_i32_62, %c0_i32_63] : memref<16x32xf32, #tpu.memory_space<vmem>> -> memref<1x32xf32, #tpu.memory_space<vmem>>
    %111 = tpu.memref_slice %arg10[%c15_i32_60] : memref<16x!tpu.dma_semaphore, #tpu.memory_space<semaphore_mem>> -> memref<1x!tpu.dma_semaphore, #tpu.memory_space<semaphore_mem>>
    %112 = tpu.memref_squeeze %111 : memref<1x!tpu.dma_semaphore, #tpu.memory_space<semaphore_mem>> -> memref<!tpu.dma_semaphore, #tpu.memory_space<semaphore_mem>>
    tpu.enqueue_dma source(%109 : memref<1x32xf32, #tpu.memory_space<any>>) target(%110 : memref<1x32xf32, #tpu.memory_space<vmem>>) target_semaphore(%112 : memref<!tpu.dma_semaphore, #tpu.memory_space<semaphore_mem>>)
    %c0 = arith.constant 0 : index
    %c0_64 = arith.constant 0 : index
    %113 = vector.load %arg3[%c0, %c0_64] : memref<16x32xf32, #tpu.memory_space<vmem>>, vector<16x32xf32>
    %c0_65 = arith.constant 0 : index
    %c0_66 = arith.constant 0 : index
    %114 = vector.load %arg2[%c0_65, %c0_66] : memref<16x1xi32, #tpu.memory_space<vmem>>, vector<16x1xi32>
    %c0_i32_67 = arith.constant 0 : i32
    %115 = vector.broadcast %c0_i32_67 : i32 to vector<16x1xi32>
    %116 = arith.cmpi eq, %114, %115 : vector<16x1xi32>
    %117 = arith.extui %116 : vector<16x1xi1> to vector<16x1xi32>
    %118 = arith.sitofp %117 : vector<16x1xi32> to vector<16x1xf32>
    %c0_68 = arith.constant 0 : index
    %c0_69 = arith.constant 0 : index
    %119 = vector.load %arg4[%c0_68, %c0_69] : memref<2x32xf32, #tpu.memory_space<vmem>>, vector<1x32xf32>
    %120 = vector.broadcast %118 : vector<16x1xf32> to vector<16x32xf32>
    %121 = vector.broadcast %119 : vector<1x32xf32> to vector<16x32xf32>
    %122 = arith.mulf %120, %121 : vector<16x32xf32>
    %123 = arith.addf %113, %122 : vector<16x32xf32>
    %c1_i32_70 = arith.constant 1 : i32
    %124 = vector.broadcast %c1_i32_70 : i32 to vector<16x1xi32>
    %125 = arith.cmpi eq, %114, %124 : vector<16x1xi32>
    %126 = arith.extui %125 : vector<16x1xi1> to vector<16x1xi32>
    %127 = arith.sitofp %126 : vector<16x1xi32> to vector<16x1xf32>
    %c1 = arith.constant 1 : index
    %c0_71 = arith.constant 0 : index
    %128 = vector.load %arg4[%c1, %c0_71] : memref<2x32xf32, #tpu.memory_space<vmem>>, vector<1x32xf32>
    %129 = vector.broadcast %127 : vector<16x1xf32> to vector<16x32xf32>
    %130 = vector.broadcast %128 : vector<1x32xf32> to vector<16x32xf32>
    %131 = arith.mulf %129, %130 : vector<16x32xf32>
    %132 = arith.addf %123, %131 : vector<16x32xf32>
    %c0_i32_72 = arith.constant 0 : i32
    %c0_i32_73 = arith.constant 0 : i32
    %c0_i32_74 = arith.constant 0 : i32
    %133 = tpu.memref_slice %arg7[%c0_i32_73, %c0_i32_74] : memref<128x32xf32, #tpu.memory_space<any>> -> memref<1x32xf32, #tpu.memory_space<any>>
    %c0_i32_75 = arith.constant 0 : i32
    %c0_i32_76 = arith.constant 0 : i32
    %134 = tpu.memref_slice %arg9[%c0_i32_75, %c0_i32_76] : memref<16x32xf32, #tpu.memory_space<vmem>> -> memref<1x32xf32, #tpu.memory_space<vmem>>
    %135 = tpu.memref_slice %arg10[%c0_i32_72] : memref<16x!tpu.dma_semaphore, #tpu.memory_space<semaphore_mem>> -> memref<1x!tpu.dma_semaphore, #tpu.memory_space<semaphore_mem>>
    %136 = tpu.memref_squeeze %135 : memref<1x!tpu.dma_semaphore, #tpu.memory_space<semaphore_mem>> -> memref<!tpu.dma_semaphore, #tpu.memory_space<semaphore_mem>>
    tpu.wait_dma2 semaphore(%136 : memref<!tpu.dma_semaphore, #tpu.memory_space<semaphore_mem>>) src(%133 : memref<1x32xf32, #tpu.memory_space<any>>) dst(%134 : memref<1x32xf32, #tpu.memory_space<vmem>>)
    %c1_i32_77 = arith.constant 1 : i32
    %c0_i32_78 = arith.constant 0 : i32
    %c0_i32_79 = arith.constant 0 : i32
    %137 = tpu.memref_slice %arg7[%c0_i32_78, %c0_i32_79] : memref<128x32xf32, #tpu.memory_space<any>> -> memref<1x32xf32, #tpu.memory_space<any>>
    %c1_i32_80 = arith.constant 1 : i32
    %c0_i32_81 = arith.constant 0 : i32
    %138 = tpu.memref_slice %arg9[%c1_i32_80, %c0_i32_81] : memref<16x32xf32, #tpu.memory_space<vmem>> -> memref<1x32xf32, #tpu.memory_space<vmem>>
    %139 = tpu.memref_slice %arg10[%c1_i32_77] : memref<16x!tpu.dma_semaphore, #tpu.memory_space<semaphore_mem>> -> memref<1x!tpu.dma_semaphore, #tpu.memory_space<semaphore_mem>>
    %140 = tpu.memref_squeeze %139 : memref<1x!tpu.dma_semaphore, #tpu.memory_space<semaphore_mem>> -> memref<!tpu.dma_semaphore, #tpu.memory_space<semaphore_mem>>
    tpu.wait_dma2 semaphore(%140 : memref<!tpu.dma_semaphore, #tpu.memory_space<semaphore_mem>>) src(%137 : memref<1x32xf32, #tpu.memory_space<any>>) dst(%138 : memref<1x32xf32, #tpu.memory_space<vmem>>)
    %c2_i32_82 = arith.constant 2 : i32
    %c0_i32_83 = arith.constant 0 : i32
    %c0_i32_84 = arith.constant 0 : i32
    %141 = tpu.memref_slice %arg7[%c0_i32_83, %c0_i32_84] : memref<128x32xf32, #tpu.memory_space<any>> -> memref<1x32xf32, #tpu.memory_space<any>>
    %c2_i32_85 = arith.constant 2 : i32
    %c0_i32_86 = arith.constant 0 : i32
    %142 = tpu.memref_slice %arg9[%c2_i32_85, %c0_i32_86] : memref<16x32xf32, #tpu.memory_space<vmem>> -> memref<1x32xf32, #tpu.memory_space<vmem>>
    %143 = tpu.memref_slice %arg10[%c2_i32_82] : memref<16x!tpu.dma_semaphore, #tpu.memory_space<semaphore_mem>> -> memref<1x!tpu.dma_semaphore, #tpu.memory_space<semaphore_mem>>
    %144 = tpu.memref_squeeze %143 : memref<1x!tpu.dma_semaphore, #tpu.memory_space<semaphore_mem>> -> memref<!tpu.dma_semaphore, #tpu.memory_space<semaphore_mem>>
    tpu.wait_dma2 semaphore(%144 : memref<!tpu.dma_semaphore, #tpu.memory_space<semaphore_mem>>) src(%141 : memref<1x32xf32, #tpu.memory_space<any>>) dst(%142 : memref<1x32xf32, #tpu.memory_space<vmem>>)
    %c3_i32_87 = arith.constant 3 : i32
    %c0_i32_88 = arith.constant 0 : i32
    %c0_i32_89 = arith.constant 0 : i32
    %145 = tpu.memref_slice %arg7[%c0_i32_88, %c0_i32_89] : memref<128x32xf32, #tpu.memory_space<any>> -> memref<1x32xf32, #tpu.memory_space<any>>
    %c3_i32_90 = arith.constant 3 : i32
    %c0_i32_91 = arith.constant 0 : i32
    %146 = tpu.memref_slice %arg9[%c3_i32_90, %c0_i32_91] : memref<16x32xf32, #tpu.memory_space<vmem>> -> memref<1x32xf32, #tpu.memory_space<vmem>>
    %147 = tpu.memref_slice %arg10[%c3_i32_87] : memref<16x!tpu.dma_semaphore, #tpu.memory_space<semaphore_mem>> -> memref<1x!tpu.dma_semaphore, #tpu.memory_space<semaphore_mem>>
    %148 = tpu.memref_squeeze %147 : memref<1x!tpu.dma_semaphore, #tpu.memory_space<semaphore_mem>> -> memref<!tpu.dma_semaphore, #tpu.memory_space<semaphore_mem>>
    tpu.wait_dma2 semaphore(%148 : memref<!tpu.dma_semaphore, #tpu.memory_space<semaphore_mem>>) src(%145 : memref<1x32xf32, #tpu.memory_space<any>>) dst(%146 : memref<1x32xf32, #tpu.memory_space<vmem>>)
    %c4_i32_92 = arith.constant 4 : i32
    %c0_i32_93 = arith.constant 0 : i32
    %c0_i32_94 = arith.constant 0 : i32
    %149 = tpu.memref_slice %arg7[%c0_i32_93, %c0_i32_94] : memref<128x32xf32, #tpu.memory_space<any>> -> memref<1x32xf32, #tpu.memory_space<any>>
    %c4_i32_95 = arith.constant 4 : i32
    %c0_i32_96 = arith.constant 0 : i32
    %150 = tpu.memref_slice %arg9[%c4_i32_95, %c0_i32_96] : memref<16x32xf32, #tpu.memory_space<vmem>> -> memref<1x32xf32, #tpu.memory_space<vmem>>
    %151 = tpu.memref_slice %arg10[%c4_i32_92] : memref<16x!tpu.dma_semaphore, #tpu.memory_space<semaphore_mem>> -> memref<1x!tpu.dma_semaphore, #tpu.memory_space<semaphore_mem>>
    %152 = tpu.memref_squeeze %151 : memref<1x!tpu.dma_semaphore, #tpu.memory_space<semaphore_mem>> -> memref<!tpu.dma_semaphore, #tpu.memory_space<semaphore_mem>>
    tpu.wait_dma2 semaphore(%152 : memref<!tpu.dma_semaphore, #tpu.memory_space<semaphore_mem>>) src(%149 : memref<1x32xf32, #tpu.memory_space<any>>) dst(%150 : memref<1x32xf32, #tpu.memory_space<vmem>>)
    %c5_i32_97 = arith.constant 5 : i32
    %c0_i32_98 = arith.constant 0 : i32
    %c0_i32_99 = arith.constant 0 : i32
    %153 = tpu.memref_slice %arg7[%c0_i32_98, %c0_i32_99] : memref<128x32xf32, #tpu.memory_space<any>> -> memref<1x32xf32, #tpu.memory_space<any>>
    %c5_i32_100 = arith.constant 5 : i32
    %c0_i32_101 = arith.constant 0 : i32
    %154 = tpu.memref_slice %arg9[%c5_i32_100, %c0_i32_101] : memref<16x32xf32, #tpu.memory_space<vmem>> -> memref<1x32xf32, #tpu.memory_space<vmem>>
    %155 = tpu.memref_slice %arg10[%c5_i32_97] : memref<16x!tpu.dma_semaphore, #tpu.memory_space<semaphore_mem>> -> memref<1x!tpu.dma_semaphore, #tpu.memory_space<semaphore_mem>>
    %156 = tpu.memref_squeeze %155 : memref<1x!tpu.dma_semaphore, #tpu.memory_space<semaphore_mem>> -> memref<!tpu.dma_semaphore, #tpu.memory_space<semaphore_mem>>
    tpu.wait_dma2 semaphore(%156 : memref<!tpu.dma_semaphore, #tpu.memory_space<semaphore_mem>>) src(%153 : memref<1x32xf32, #tpu.memory_space<any>>) dst(%154 : memref<1x32xf32, #tpu.memory_space<vmem>>)
    %c6_i32_102 = arith.constant 6 : i32
    %c0_i32_103 = arith.constant 0 : i32
    %c0_i32_104 = arith.constant 0 : i32
    %157 = tpu.memref_slice %arg7[%c0_i32_103, %c0_i32_104] : memref<128x32xf32, #tpu.memory_space<any>> -> memref<1x32xf32, #tpu.memory_space<any>>
    %c6_i32_105 = arith.constant 6 : i32
    %c0_i32_106 = arith.constant 0 : i32
    %158 = tpu.memref_slice %arg9[%c6_i32_105, %c0_i32_106] : memref<16x32xf32, #tpu.memory_space<vmem>> -> memref<1x32xf32, #tpu.memory_space<vmem>>
    %159 = tpu.memref_slice %arg10[%c6_i32_102] : memref<16x!tpu.dma_semaphore, #tpu.memory_space<semaphore_mem>> -> memref<1x!tpu.dma_semaphore, #tpu.memory_space<semaphore_mem>>
    %160 = tpu.memref_squeeze %159 : memref<1x!tpu.dma_semaphore, #tpu.memory_space<semaphore_mem>> -> memref<!tpu.dma_semaphore, #tpu.memory_space<semaphore_mem>>
    tpu.wait_dma2 semaphore(%160 : memref<!tpu.dma_semaphore, #tpu.memory_space<semaphore_mem>>) src(%157 : memref<1x32xf32, #tpu.memory_space<any>>) dst(%158 : memref<1x32xf32, #tpu.memory_space<vmem>>)
    %c7_i32_107 = arith.constant 7 : i32
    %c0_i32_108 = arith.constant 0 : i32
    %c0_i32_109 = arith.constant 0 : i32
    %161 = tpu.memref_slice %arg7[%c0_i32_108, %c0_i32_109] : memref<128x32xf32, #tpu.memory_space<any>> -> memref<1x32xf32, #tpu.memory_space<any>>
    %c7_i32_110 = arith.constant 7 : i32
    %c0_i32_111 = arith.constant 0 : i32
    %162 = tpu.memref_slice %arg9[%c7_i32_110, %c0_i32_111] : memref<16x32xf32, #tpu.memory_space<vmem>> -> memref<1x32xf32, #tpu.memory_space<vmem>>
    %163 = tpu.memref_slice %arg10[%c7_i32_107] : memref<16x!tpu.dma_semaphore, #tpu.memory_space<semaphore_mem>> -> memref<1x!tpu.dma_semaphore, #tpu.memory_space<semaphore_mem>>
    %164 = tpu.memref_squeeze %163 : memref<1x!tpu.dma_semaphore, #tpu.memory_space<semaphore_mem>> -> memref<!tpu.dma_semaphore, #tpu.memory_space<semaphore_mem>>
    tpu.wait_dma2 semaphore(%164 : memref<!tpu.dma_semaphore, #tpu.memory_space<semaphore_mem>>) src(%161 : memref<1x32xf32, #tpu.memory_space<any>>) dst(%162 : memref<1x32xf32, #tpu.memory_space<vmem>>)
    %c8_i32_112 = arith.constant 8 : i32
    %c0_i32_113 = arith.constant 0 : i32
    %c0_i32_114 = arith.constant 0 : i32
    %165 = tpu.memref_slice %arg7[%c0_i32_113, %c0_i32_114] : memref<128x32xf32, #tpu.memory_space<any>> -> memref<1x32xf32, #tpu.memory_space<any>>
    %c8_i32_115 = arith.constant 8 : i32
    %c0_i32_116 = arith.constant 0 : i32
    %166 = tpu.memref_slice %arg9[%c8_i32_115, %c0_i32_116] : memref<16x32xf32, #tpu.memory_space<vmem>> -> memref<1x32xf32, #tpu.memory_space<vmem>>
    %167 = tpu.memref_slice %arg10[%c8_i32_112] : memref<16x!tpu.dma_semaphore, #tpu.memory_space<semaphore_mem>> -> memref<1x!tpu.dma_semaphore, #tpu.memory_space<semaphore_mem>>
    %168 = tpu.memref_squeeze %167 : memref<1x!tpu.dma_semaphore, #tpu.memory_space<semaphore_mem>> -> memref<!tpu.dma_semaphore, #tpu.memory_space<semaphore_mem>>
    tpu.wait_dma2 semaphore(%168 : memref<!tpu.dma_semaphore, #tpu.memory_space<semaphore_mem>>) src(%165 : memref<1x32xf32, #tpu.memory_space<any>>) dst(%166 : memref<1x32xf32, #tpu.memory_space<vmem>>)
    %c9_i32_117 = arith.constant 9 : i32
    %c0_i32_118 = arith.constant 0 : i32
    %c0_i32_119 = arith.constant 0 : i32
    %169 = tpu.memref_slice %arg7[%c0_i32_118, %c0_i32_119] : memref<128x32xf32, #tpu.memory_space<any>> -> memref<1x32xf32, #tpu.memory_space<any>>
    %c9_i32_120 = arith.constant 9 : i32
    %c0_i32_121 = arith.constant 0 : i32
    %170 = tpu.memref_slice %arg9[%c9_i32_120, %c0_i32_121] : memref<16x32xf32, #tpu.memory_space<vmem>> -> memref<1x32xf32, #tpu.memory_space<vmem>>
    %171 = tpu.memref_slice %arg10[%c9_i32_117] : memref<16x!tpu.dma_semaphore, #tpu.memory_space<semaphore_mem>> -> memref<1x!tpu.dma_semaphore, #tpu.memory_space<semaphore_mem>>
    %172 = tpu.memref_squeeze %171 : memref<1x!tpu.dma_semaphore, #tpu.memory_space<semaphore_mem>> -> memref<!tpu.dma_semaphore, #tpu.memory_space<semaphore_mem>>
    tpu.wait_dma2 semaphore(%172 : memref<!tpu.dma_semaphore, #tpu.memory_space<semaphore_mem>>) src(%169 : memref<1x32xf32, #tpu.memory_space<any>>) dst(%170 : memref<1x32xf32, #tpu.memory_space<vmem>>)
    %c10_i32_122 = arith.constant 10 : i32
    %c0_i32_123 = arith.constant 0 : i32
    %c0_i32_124 = arith.constant 0 : i32
    %173 = tpu.memref_slice %arg7[%c0_i32_123, %c0_i32_124] : memref<128x32xf32, #tpu.memory_space<any>> -> memref<1x32xf32, #tpu.memory_space<any>>
    %c10_i32_125 = arith.constant 10 : i32
    %c0_i32_126 = arith.constant 0 : i32
    %174 = tpu.memref_slice %arg9[%c10_i32_125, %c0_i32_126] : memref<16x32xf32, #tpu.memory_space<vmem>> -> memref<1x32xf32, #tpu.memory_space<vmem>>
    %175 = tpu.memref_slice %arg10[%c10_i32_122] : memref<16x!tpu.dma_semaphore, #tpu.memory_space<semaphore_mem>> -> memref<1x!tpu.dma_semaphore, #tpu.memory_space<semaphore_mem>>
    %176 = tpu.memref_squeeze %175 : memref<1x!tpu.dma_semaphore, #tpu.memory_space<semaphore_mem>> -> memref<!tpu.dma_semaphore, #tpu.memory_space<semaphore_mem>>
    tpu.wait_dma2 semaphore(%176 : memref<!tpu.dma_semaphore, #tpu.memory_space<semaphore_mem>>) src(%173 : memref<1x32xf32, #tpu.memory_space<any>>) dst(%174 : memref<1x32xf32, #tpu.memory_space<vmem>>)
    %c11_i32_127 = arith.constant 11 : i32
    %c0_i32_128 = arith.constant 0 : i32
    %c0_i32_129 = arith.constant 0 : i32
    %177 = tpu.memref_slice %arg7[%c0_i32_128, %c0_i32_129] : memref<128x32xf32, #tpu.memory_space<any>> -> memref<1x32xf32, #tpu.memory_space<any>>
    %c11_i32_130 = arith.constant 11 : i32
    %c0_i32_131 = arith.constant 0 : i32
    %178 = tpu.memref_slice %arg9[%c11_i32_130, %c0_i32_131] : memref<16x32xf32, #tpu.memory_space<vmem>> -> memref<1x32xf32, #tpu.memory_space<vmem>>
    %179 = tpu.memref_slice %arg10[%c11_i32_127] : memref<16x!tpu.dma_semaphore, #tpu.memory_space<semaphore_mem>> -> memref<1x!tpu.dma_semaphore, #tpu.memory_space<semaphore_mem>>
    %180 = tpu.memref_squeeze %179 : memref<1x!tpu.dma_semaphore, #tpu.memory_space<semaphore_mem>> -> memref<!tpu.dma_semaphore, #tpu.memory_space<semaphore_mem>>
    tpu.wait_dma2 semaphore(%180 : memref<!tpu.dma_semaphore, #tpu.memory_space<semaphore_mem>>) src(%177 : memref<1x32xf32, #tpu.memory_space<any>>) dst(%178 : memref<1x32xf32, #tpu.memory_space<vmem>>)
    %c12_i32_132 = arith.constant 12 : i32
    %c0_i32_133 = arith.constant 0 : i32
    %c0_i32_134 = arith.constant 0 : i32
    %181 = tpu.memref_slice %arg7[%c0_i32_133, %c0_i32_134] : memref<128x32xf32, #tpu.memory_space<any>> -> memref<1x32xf32, #tpu.memory_space<any>>
    %c12_i32_135 = arith.constant 12 : i32
    %c0_i32_136 = arith.constant 0 : i32
    %182 = tpu.memref_slice %arg9[%c12_i32_135, %c0_i32_136] : memref<16x32xf32, #tpu.memory_space<vmem>> -> memref<1x32xf32, #tpu.memory_space<vmem>>
    %183 = tpu.memref_slice %arg10[%c12_i32_132] : memref<16x!tpu.dma_semaphore, #tpu.memory_space<semaphore_mem>> -> memref<1x!tpu.dma_semaphore, #tpu.memory_space<semaphore_mem>>
    %184 = tpu.memref_squeeze %183 : memref<1x!tpu.dma_semaphore, #tpu.memory_space<semaphore_mem>> -> memref<!tpu.dma_semaphore, #tpu.memory_space<semaphore_mem>>
    tpu.wait_dma2 semaphore(%184 : memref<!tpu.dma_semaphore, #tpu.memory_space<semaphore_mem>>) src(%181 : memref<1x32xf32, #tpu.memory_space<any>>) dst(%182 : memref<1x32xf32, #tpu.memory_space<vmem>>)
    %c13_i32_137 = arith.constant 13 : i32
    %c0_i32_138 = arith.constant 0 : i32
    %c0_i32_139 = arith.constant 0 : i32
    %185 = tpu.memref_slice %arg7[%c0_i32_138, %c0_i32_139] : memref<128x32xf32, #tpu.memory_space<any>> -> memref<1x32xf32, #tpu.memory_space<any>>
    %c13_i32_140 = arith.constant 13 : i32
    %c0_i32_141 = arith.constant 0 : i32
    %186 = tpu.memref_slice %arg9[%c13_i32_140, %c0_i32_141] : memref<16x32xf32, #tpu.memory_space<vmem>> -> memref<1x32xf32, #tpu.memory_space<vmem>>
    %187 = tpu.memref_slice %arg10[%c13_i32_137] : memref<16x!tpu.dma_semaphore, #tpu.memory_space<semaphore_mem>> -> memref<1x!tpu.dma_semaphore, #tpu.memory_space<semaphore_mem>>
    %188 = tpu.memref_squeeze %187 : memref<1x!tpu.dma_semaphore, #tpu.memory_space<semaphore_mem>> -> memref<!tpu.dma_semaphore, #tpu.memory_space<semaphore_mem>>
    tpu.wait_dma2 semaphore(%188 : memref<!tpu.dma_semaphore, #tpu.memory_space<semaphore_mem>>) src(%185 : memref<1x32xf32, #tpu.memory_space<any>>) dst(%186 : memref<1x32xf32, #tpu.memory_space<vmem>>)
    %c14_i32_142 = arith.constant 14 : i32
    %c0_i32_143 = arith.constant 0 : i32
    %c0_i32_144 = arith.constant 0 : i32
    %189 = tpu.memref_slice %arg7[%c0_i32_143, %c0_i32_144] : memref<128x32xf32, #tpu.memory_space<any>> -> memref<1x32xf32, #tpu.memory_space<any>>
    %c14_i32_145 = arith.constant 14 : i32
    %c0_i32_146 = arith.constant 0 : i32
    %190 = tpu.memref_slice %arg9[%c14_i32_145, %c0_i32_146] : memref<16x32xf32, #tpu.memory_space<vmem>> -> memref<1x32xf32, #tpu.memory_space<vmem>>
    %191 = tpu.memref_slice %arg10[%c14_i32_142] : memref<16x!tpu.dma_semaphore, #tpu.memory_space<semaphore_mem>> -> memref<1x!tpu.dma_semaphore, #tpu.memory_space<semaphore_mem>>
    %192 = tpu.memref_squeeze %191 : memref<1x!tpu.dma_semaphore, #tpu.memory_space<semaphore_mem>> -> memref<!tpu.dma_semaphore, #tpu.memory_space<semaphore_mem>>
    tpu.wait_dma2 semaphore(%192 : memref<!tpu.dma_semaphore, #tpu.memory_space<semaphore_mem>>) src(%189 : memref<1x32xf32, #tpu.memory_space<any>>) dst(%190 : memref<1x32xf32, #tpu.memory_space<vmem>>)
    %c15_i32_147 = arith.constant 15 : i32
    %c0_i32_148 = arith.constant 0 : i32
    %c0_i32_149 = arith.constant 0 : i32
    %193 = tpu.memref_slice %arg7[%c0_i32_148, %c0_i32_149] : memref<128x32xf32, #tpu.memory_space<any>> -> memref<1x32xf32, #tpu.memory_space<any>>
    %c15_i32_150 = arith.constant 15 : i32
    %c0_i32_151 = arith.constant 0 : i32
    %194 = tpu.memref_slice %arg9[%c15_i32_150, %c0_i32_151] : memref<16x32xf32, #tpu.memory_space<vmem>> -> memref<1x32xf32, #tpu.memory_space<vmem>>
    %195 = tpu.memref_slice %arg10[%c15_i32_147] : memref<16x!tpu.dma_semaphore, #tpu.memory_space<semaphore_mem>> -> memref<1x!tpu.dma_semaphore, #tpu.memory_space<semaphore_mem>>
    %196 = tpu.memref_squeeze %195 : memref<1x!tpu.dma_semaphore, #tpu.memory_space<semaphore_mem>> -> memref<!tpu.dma_semaphore, #tpu.memory_space<semaphore_mem>>
    tpu.wait_dma2 semaphore(%196 : memref<!tpu.dma_semaphore, #tpu.memory_space<semaphore_mem>>) src(%193 : memref<1x32xf32, #tpu.memory_space<any>>) dst(%194 : memref<1x32xf32, #tpu.memory_space<vmem>>)
    %c0_152 = arith.constant 0 : index
    %c0_153 = arith.constant 0 : index
    %197 = vector.load %arg9[%c0_152, %c0_153] : memref<16x32xf32, #tpu.memory_space<vmem>>, vector<16x32xf32>
    %198 = arith.addf %132, %197 : vector<16x32xf32>
    %cst = arith.constant dense<0.000000e+00> : vector<16xf32>
    %199 = vector.multi_reduction <add>, %198, %cst [1] : vector<16x32xf32> to vector<16xf32>
    %200 = vector.shape_cast %199 : vector<16xf32> to vector<16x1xf32>
    %cst_154 = arith.constant 3.200000e+01 : f32
    %201 = vector.broadcast %cst_154 : f32 to vector<16x1xf32>
    %202 = arith.divf %200, %201 : vector<16x1xf32>
    %203 = vector.broadcast %202 : vector<16x1xf32> to vector<16x32xf32>
    %204 = arith.subf %198, %203 : vector<16x32xf32>
    %205 = arith.mulf %204, %204 : vector<16x32xf32>
    %cst_155 = arith.constant dense<0.000000e+00> : vector<16xf32>
    %206 = vector.multi_reduction <add>, %205, %cst_155 [1] : vector<16x32xf32> to vector<16xf32>
    %207 = vector.shape_cast %206 : vector<16xf32> to vector<16x1xf32>
    %cst_156 = arith.constant 3.200000e+01 : f32
    %208 = vector.broadcast %cst_156 : f32 to vector<16x1xf32>
    %209 = arith.divf %207, %208 : vector<16x1xf32>
    %cst_157 = arith.constant 9.99999996E-13 : f32
    %210 = vector.broadcast %cst_157 : f32 to vector<16x1xf32>
    %211 = arith.addf %209, %210 : vector<16x1xf32>
    %212 = math.rsqrt %211 : vector<16x1xf32>
    %213 = vector.broadcast %212 : vector<16x1xf32> to vector<16x32xf32>
    %214 = arith.mulf %204, %213 : vector<16x32xf32>
    %c0_158 = arith.constant 0 : index
    %c0_159 = arith.constant 0 : index
    %215 = vector.load %arg5[%c0_158, %c0_159] : memref<1x32xf32, #tpu.memory_space<vmem>>, vector<1x32xf32>
    %216 = vector.broadcast %215 : vector<1x32xf32> to vector<16x32xf32>
    %217 = arith.mulf %216, %214 : vector<16x32xf32>
    %c0_160 = arith.constant 0 : index
    %c0_161 = arith.constant 0 : index
    %218 = vector.load %arg6[%c0_160, %c0_161] : memref<1x32xf32, #tpu.memory_space<vmem>>, vector<1x32xf32>
    %219 = vector.broadcast %218 : vector<1x32xf32> to vector<16x32xf32>
    %220 = arith.addf %217, %219 : vector<16x32xf32>
    %c0_162 = arith.constant 0 : index
    %c0_163 = arith.constant 0 : index
    %221 = vector.load %arg8[%c0_162, %c0_163] : memref<16x32xf32, #tpu.memory_space<vmem>>, vector<16x32xf32>
    tpu.vector_store %arg8[%c0_162, %c0_163], %220 {strides = array<i32>} : memref<16x32xf32, #tpu.memory_space<vmem>>, vector<16x32xf32>,
    return
  }
  func.func @transform_0(%arg0: i32, %arg1: memref<16xi32, #tpu.memory_space<smem>>) -> (i32, i32) {
    %c0_i32 = arith.constant 0 : i32
    %c0_i32_0 = arith.constant 0 : i32
    return %arg0, %c0_i32 : i32, i32
  }
  func.func @transform_1(%arg0: i32, %arg1: memref<16xi32, #tpu.memory_space<smem>>) -> (i32, i32) {
    %c0_i32 = arith.constant 0 : i32
    %c0_i32_0 = arith.constant 0 : i32
    %c0_i32_1 = arith.constant 0 : i32
    return %c0_i32, %c0_i32_0 : i32, i32
  }
  func.func @transform_2(%arg0: i32, %arg1: memref<16xi32, #tpu.memory_space<smem>>) -> (i32, i32) {
    %c0_i32 = arith.constant 0 : i32
    %c0_i32_0 = arith.constant 0 : i32
    %c0_i32_1 = arith.constant 0 : i32
    return %c0_i32, %c0_i32_0 : i32, i32
  }
  func.func @transform_3(%arg0: i32, %arg1: memref<16xi32, #tpu.memory_space<smem>>) -> (i32, i32) {
    %c0_i32 = arith.constant 0 : i32
    %c0_i32_0 = arith.constant 0 : i32
    %c0_i32_1 = arith.constant 0 : i32
    return %c0_i32, %c0_i32_0 : i32, i32
  }
  func.func @transform_4(%arg0: i32, %arg1: memref<16xi32, #tpu.memory_space<smem>>) -> (i32, i32) {
    %c0_i32 = arith.constant 0 : i32
    %c0_i32_0 = arith.constant 0 : i32
    %c0_i32_1 = arith.constant 0 : i32
    return %c0_i32, %c0_i32_0 : i32, i32
  }
  func.func @transform_6(%arg0: i32, %arg1: memref<16xi32, #tpu.memory_space<smem>>) -> (i32, i32) {
    %c0_i32 = arith.constant 0 : i32
    %c0_i32_0 = arith.constant 0 : i32
    return %arg0, %c0_i32 : i32, i32
  }
}

</mosaic_0001>

<llo_original>
// kernel: tpu_custom_call.1
$region0: #{tpu_custom_call.1}
  #allocation0 [shape = 'u32[]', space=smem, size = 0x4, offset = 0x4, fixed_abs, tag = 'smem constant byte address 0x4 - core index']
  #allocation1 [shape = 'u32[144,128]{1,0:T(1,128)}', space=vmem, size = 0x12000, scoped, tag = 'internal scratch']
  #allocation2 [shape = 'f32[16,32]{1,0:T(8,128)}', space=vmem, size = 0x2000, scoped, tag = 'scratch operand']
  #allocation3 [shape = 's32[16]{0}', space=sflag, size = 0x40, scoped, tag = 'scratch operand']
  #allocation4 [shape = 's32[1]{0}', space=sflag, size = 0x4, scoped, tag = 'scoped memory for tpu_custom_call.1']
  #allocation5 [shape = 'u8[512]{0}', space=smem, size = 0x200, scoped, tag = 'prefetched SMEM operand 0']
  #allocation8 [shape = 's32[]', space=sflag, size = 0x4, offset = 0, fixed_abs, tag = 'sflag constant byte address 0x0 - dummy sync flag']
  #allocation9 [shape = 's32[]', space=sflag, size = 0x4, offset = 0, fixed_abs, tag = 'sflag constant byte address 0x0 - dummy sync flag']
  #allocation10 [shape = 's32[]', space=sflag, size = 0x4, offset = 0, fixed_abs, tag = 'sflag constant byte address 0x0 - dummy sync flag']
  #allocation11 [shape = 's32[]', space=sflag, size = 0x4, offset = 0, fixed_abs, tag = 'sflag constant byte address 0x0 - dummy sync flag']
  #allocation12 [shape = 's32[]', space=sflag, size = 0x4, offset = 0, fixed_abs, tag = 'sflag constant byte address 0x0 - dummy sync flag']
  #allocation13 [shape = 's32[]', space=sflag, size = 0x4, offset = 0, fixed_abs, tag = 'sflag constant byte address 0x0 - dummy sync flag']
  #allocation14 [shape = 's32[]', space=sflag, size = 0x4, offset = 0, fixed_abs, tag = 'sflag constant byte address 0x0 - dummy sync flag']
  #allocation15 [shape = 's32[]', space=sflag, size = 0x4, offset = 0, fixed_abs, tag = 'sflag constant byte address 0x0 - dummy sync flag']
  #allocation16 [shape = 's32[]', space=sflag, size = 0x4, offset = 0, fixed_abs, tag = 'sflag constant byte address 0x0 - dummy sync flag']
  #allocation17 [shape = 's32[]', space=sflag, size = 0x4, offset = 0, fixed_abs, tag = 'sflag constant byte address 0x0 - dummy sync flag']
  #allocation18 [shape = 's32[]', space=sflag, size = 0x4, offset = 0, fixed_abs, tag = 'sflag constant byte address 0x0 - dummy sync flag']
  #allocation19 [shape = 's32[]', space=sflag, size = 0x4, offset = 0, fixed_abs, tag = 'sflag constant byte address 0x0 - dummy sync flag']
  #allocation20 [shape = 's32[]', space=sflag, size = 0x4, offset = 0, fixed_abs, tag = 'sflag constant byte address 0x0 - dummy sync flag']
  #allocation21 [shape = 's32[]', space=sflag, size = 0x4, offset = 0, fixed_abs, tag = 'sflag constant byte address 0x0 - dummy sync flag']
  #allocation22 [shape = 's32[]', space=sflag, size = 0x4, offset = 0, fixed_abs, tag = 'sflag constant byte address 0x0 - dummy sync flag']
  #allocation23 [shape = 's32[]', space=sflag, size = 0x4, offset = 0, fixed_abs, tag = 'sflag constant byte address 0x0 - dummy sync flag']
  %s0 = inlined_call_operand.vmem [shape: s32[16], index: 0, kind: input, shape index: {}]
  %s1 = inlined_call_operand.vmem [shape: s32[16,1], index: 1, kind: input, shape index: {}]
  %s2 = inlined_call_operand.vmem [shape: f32[16,32], index: 2, kind: input, shape index: {}]
  %s3 = inlined_call_operand.vmem [shape: f32[2,32], index: 3, kind: input, shape index: {}]
  %s4 = inlined_call_operand.vmem [shape: f32[1,32], index: 4, kind: input, shape index: {}]
  %s5 = inlined_call_operand.vmem [shape: f32[1,32], index: 5, kind: input, shape index: {}]
  %s6 = inlined_call_operand.vmem [shape: f32[128,32], index: 6, kind: input, shape index: {}]
  %s7 = inlined_call_operand.hbm [shape: f32[16,32], index: 7, kind: output, shape index: {}]
  %s8 = sld [smem:[#allocation0]]
  $region510: #{tpu_custom_call.1} parent=0
    _
  %s10 = ssub.s32 1, %s8
  %s11 = scalar_select 0, %s10, %s8
  %s12 = sshll.u32 %s0, 4
  %s13 = int_to_ptr.vmem [resolvable:$true] %s12
  %15 = dma.vmem_to_smem %s13, 16, [#allocation5], [#allocation4]
  %16 = dma.done [#allocation4], 16
  %17 = sfence
  $region1: #{tpu_custom_call.1} parent=0
    #allocation6 [shape = 'u8[8192]{0}', space=vmem, size = 0x2000, scoped, tag = 'output window, operand 0, single buffered']
    #allocation7 [shape = 's32[1]{0}', space=sflag, size = 0x4, scoped, tag = 'scoped memory for tpu_custom_call.1']
    %18 = vsyncpa [#allocation7], 0
    // Predicated region
    $region2: #{tpu_custom_call.1} parent=1 // pred_check
      _
    $region3: #{tpu_custom_call.1} parent=1 // pred_check_branch
      %20 = sbr.rel (0) target = $region5
    $region4: #{tpu_custom_call.1} parent=1 // pred_region
      _
    $region5: #{tpu_custom_call.1} parent=1 // pred_fallthru
      _
    // Predicated region
    $region6: #{tpu_custom_call.1} parent=1 // pred_check
      _
    $region7: #{tpu_custom_call.1} parent=1 // pred_check_branch
      %22 = sbr.rel (0) target = $region9
    $region8: #{tpu_custom_call.1} parent=1 // pred_region
      _
    $region9: #{tpu_custom_call.1} parent=1 // pred_fallthru
      _
    // Predicated region
    $region10: #{tpu_custom_call.1} parent=1 // pred_check
      _
    $region11: #{tpu_custom_call.1} parent=1 // pred_check_branch
      %24 = sbr.rel (0) target = $region13
    $region12: #{tpu_custom_call.1} parent=1 // pred_region
      _
    $region13: #{tpu_custom_call.1} parent=1 // pred_fallthru
      _
    // Predicated region
    $region14: #{tpu_custom_call.1} parent=1 // pred_check
      _
    $region15: #{tpu_custom_call.1} parent=1 // pred_check_branch
      %26 = sbr.rel (0) target = $region17
    $region16: #{tpu_custom_call.1} parent=1 // pred_region
      _
    $region17: #{tpu_custom_call.1} parent=1 // pred_fallthru
      _
    // Predicated region
    $region18: #{tpu_custom_call.1} parent=1 // pred_check
      _
    $region19: #{tpu_custom_call.1} parent=1 // pred_check_branch
      %28 = sbr.rel (0) target = $region21
    $region20: #{tpu_custom_call.1} parent=1 // pred_region
      _
    $region21: #{tpu_custom_call.1} parent=1 // pred_fallthru
      _
    %s29 = smul.u32 0, 16
    %s30 = sld [smem:[#allocation5 + %s29]]
    %s31 = scalar_lea.vmem %s6, %s30
    %p33 = scmp.lt.u32.totalorder 1, 8
    %p34 = pneg %p33
    // Predicated region
    $region22: #{tpu_custom_call.1} parent=1 // pred_check
      _
    $region23: #{tpu_custom_call.1} parent=1 // pred_check_branch
      %36 = sbr.rel (%p33) target = $region25
    $region24: #{tpu_custom_call.1} parent=1 // pred_region
      %s51 = sand.u32 1, 7
      %p52 = scmp.eq.s32.totalorder %s51, 0
      %p53 = pneg %p52
      // Predicated region
      $region37: #{tpu_custom_call.1} parent=24 // pred_check
        _
      $region38: #{tpu_custom_call.1} parent=24 // pred_check_branch
        %55 = sbr.rel (%p52) target = $region40
      $region39: #{tpu_custom_call.1} parent=24 // pred_region
        %s56 = sand.u32 1, 7
        %s57 = ssub.s32 1, %s56
        %s58 = scalar_lea.vmem %s31, %s57
        %s59 = ssub.s32 1, %s56
        %s60 = scalar_lea.vmem [#allocation2], %s59
        %s61 = sshllo.u32 0, %s56
        loop: start=0, step=1, limit=1
        $region41: #{tpu_custom_call.1} parent=39 // loop_pre_header
          _
        $region42: #{tpu_custom_call.1} parent=39 // loop_header
          %s63 = sphi 0, %s67
          %p64 = scmp.ge.s32.totalorder %s63, 1
          %s68 = sphi %s58, %s58
          %s69 = sphi %s60, %s60
        $region43: #{tpu_custom_call.1} parent=39 // loop_header_branch
          %66 = sbr.rel (%p64) target = $region47
        $region44: #{tpu_custom_call.1} parent=39 // loop_body
          %v70 = vld [vmem:[%s68] sm:%s61]
          %71 = vst [vmem:[%s69] sm:%s61] %v70
        $region45: #{tpu_custom_call.1} parent=39 // loop_footer
          %s67 = sadd.s32 1, %s63
        $region46: #{tpu_custom_call.1} parent=39 // loop_footer_branch
          %62 = sbr.rel target = $region42
        $region47: #{tpu_custom_call.1} parent=39 // loop_exit
          _
      $region40: #{tpu_custom_call.1} parent=24 // pred_fallthru
        _
    $region25: #{tpu_custom_call.1} parent=1 // pred_fallthru
      _
    // Predicated region
    $region26: #{tpu_custom_call.1} parent=1 // pred_check
      %p37 = pneg %p33
    $region27: #{tpu_custom_call.1} parent=1 // pred_check_branch
      %39 = sbr.rel (%p37) target = $region29
    $region28: #{tpu_custom_call.1} parent=1 // pred_region
      %s40 = sshllo.u32 0, 1
      loop: start=0, step=1, limit=1
      $region30: #{tpu_custom_call.1} parent=28 // loop_pre_header
        _
      $region31: #{tpu_custom_call.1} parent=28 // loop_header
        %s42 = sphi 0, %s46
        %p43 = scmp.ge.s32.totalorder %s42, 1
        %s47 = sphi %s31, %s31
        %s48 = sphi [#allocation2], [#allocation2]
      $region32: #{tpu_custom_call.1} parent=28 // loop_header_branch
        %45 = sbr.rel (%p43) target = $region36
      $region33: #{tpu_custom_call.1} parent=28 // loop_body
        %v49 = vld [vmem:[%s47] sm:%s40]
        %50 = vst [vmem:[%s48] sm:%s40] %v49
      $region34: #{tpu_custom_call.1} parent=28 // loop_footer
        %s46 = sadd.s32 1, %s42
      $region35: #{tpu_custom_call.1} parent=28 // loop_footer_branch
        %41 = sbr.rel target = $region31
      $region36: #{tpu_custom_call.1} parent=28 // loop_exit
        _
    $region29: #{tpu_custom_call.1} parent=1 // pred_fallthru
      _
    // Predicated region
    $region48: #{tpu_custom_call.1} parent=1 // pred_check
      _
    $region49: #{tpu_custom_call.1} parent=1 // pred_check_branch
      %74 = sbr.rel (0) target = $region51
    $region50: #{tpu_custom_call.1} parent=1 // pred_region
      %75 = vsyncadd [#allocation3], 16
    $region51: #{tpu_custom_call.1} parent=1 // pred_fallthru
      _
    %s76 = sadd.s32 %s29, 1
    %s77 = sld [smem:[#allocation5 + %s76]]
    %s78 = scalar_lea.vmem %s6, %s77
    %s79 = scalar_lea.vmem [#allocation2], 1
    %s80 = scalar_lea.sflag [#allocation3], 1
    %p82 = scmp.lt.u32.totalorder 1, 8
    %p83 = pneg %p82
    // Predicated region
    $region52: #{tpu_custom_call.1} parent=1 // pred_check
      _
    $region53: #{tpu_custom_call.1} parent=1 // pred_check_branch
      %85 = sbr.rel (%p82) target = $region55
    $region54: #{tpu_custom_call.1} parent=1 // pred_region
      %s100 = sand.u32 1, 7
      %p101 = scmp.eq.s32.totalorder %s100, 0
      %p102 = pneg %p101
      // Predicated region
      $region67: #{tpu_custom_call.1} parent=54 // pred_check
        _
      $region68: #{tpu_custom_call.1} parent=54 // pred_check_branch
        %104 = sbr.rel (%p101) target = $region70
      $region69: #{tpu_custom_call.1} parent=54 // pred_region
        %s105 = sand.u32 1, 7
        %s106 = ssub.s32 1, %s105
        %s107 = scalar_lea.vmem %s78, %s106
        %s108 = ssub.s32 1, %s105
        %s109 = scalar_lea.vmem %s79, %s108 [#allocation2]
        %s110 = sshllo.u32 0, %s105
        loop: start=0, step=1, limit=1
        $region71: #{tpu_custom_call.1} parent=69 // loop_pre_header
          _
        $region72: #{tpu_custom_call.1} parent=69 // loop_header
          %s112 = sphi 0, %s116
          %p113 = scmp.ge.s32.totalorder %s112, 1
          %s117 = sphi %s107, %s107
          %s118 = sphi %s109, %s109
        $region73: #{tpu_custom_call.1} parent=69 // loop_header_branch
          %115 = sbr.rel (%p113) target = $region77
        $region74: #{tpu_custom_call.1} parent=69 // loop_body
          %v119 = vld [vmem:[%s117] sm:%s110]
          %120 = vst [vmem:[%s118] sm:%s110] %v119
        $region75: #{tpu_custom_call.1} parent=69 // loop_footer
          %s116 = sadd.s32 1, %s112
        $region76: #{tpu_custom_call.1} parent=69 // loop_footer_branch
          %111 = sbr.rel target = $region72
        $region77: #{tpu_custom_call.1} parent=69 // loop_exit
          _
      $region70: #{tpu_custom_call.1} parent=54 // pred_fallthru
        _
    $region55: #{tpu_custom_call.1} parent=1 // pred_fallthru
      _
    // Predicated region
    $region56: #{tpu_custom_call.1} parent=1 // pred_check
      %p86 = pneg %p82
    $region57: #{tpu_custom_call.1} parent=1 // pred_check_branch
      %88 = sbr.rel (%p86) target = $region59
    $region58: #{tpu_custom_call.1} parent=1 // pred_region
      %s89 = sshllo.u32 0, 1
      loop: start=0, step=1, limit=1
      $region60: #{tpu_custom_call.1} parent=58 // loop_pre_header
        _
      $region61: #{tpu_custom_call.1} parent=58 // loop_header
        %s91 = sphi 0, %s95
        %p92 = scmp.ge.s32.totalorder %s91, 1
        %s96 = sphi %s78, %s78
        %s97 = sphi %s79, %s79
      $region62: #{tpu_custom_call.1} parent=58 // loop_header_branch
        %94 = sbr.rel (%p92) target = $region66
      $region63: #{tpu_custom_call.1} parent=58 // loop_body
        %v98 = vld [vmem:[%s96] sm:%s89]
        %99 = vst [vmem:[%s97] sm:%s89] %v98
      $region64: #{tpu_custom_call.1} parent=58 // loop_footer
        %s95 = sadd.s32 1, %s91
      $region65: #{tpu_custom_call.1} parent=58 // loop_footer_branch
        %90 = sbr.rel target = $region61
      $region66: #{tpu_custom_call.1} parent=58 // loop_exit
        _
    $region59: #{tpu_custom_call.1} parent=1 // pred_fallthru
      _
    // Predicated region
    $region78: #{tpu_custom_call.1} parent=1 // pred_check
      _
    $region79: #{tpu_custom_call.1} parent=1 // pred_check_branch
      %123 = sbr.rel (0) target = $region81
    $region80: #{tpu_custom_call.1} parent=1 // pred_region
      %124 = vsyncadd %s80, 16
    $region81: #{tpu_custom_call.1} parent=1 // pred_fallthru
      _
    %s125 = sadd.s32 %s29, 2
    %s126 = sld [smem:[#allocation5 + %s125]]
    %s127 = scalar_lea.vmem %s6, %s126
    %s128 = scalar_lea.vmem [#allocation2], 2
    %s129 = scalar_lea.sflag [#allocation3], 2
    %p131 = scmp.lt.u32.totalorder 1, 8
    %p132 = pneg %p131
    // Predicated region
    $region82: #{tpu_custom_call.1} parent=1 // pred_check
      _
    $region83: #{tpu_custom_call.1} parent=1 // pred_check_branch
      %134 = sbr.rel (%p131) target = $region85
    $region84: #{tpu_custom_call.1} parent=1 // pred_region
      %s149 = sand.u32 1, 7
      %p150 = scmp.eq.s32.totalorder %s149, 0
      %p151 = pneg %p150
      // Predicated region
      $region97: #{tpu_custom_call.1} parent=84 // pred_check
        _
      $region98: #{tpu_custom_call.1} parent=84 // pred_check_branch
        %153 = sbr.rel (%p150) target = $region100
      $region99: #{tpu_custom_call.1} parent=84 // pred_region
        %s154 = sand.u32 1, 7
        %s155 = ssub.s32 1, %s154
        %s156 = scalar_lea.vmem %s127, %s155
        %s157 = ssub.s32 1, %s154
        %s158 = scalar_lea.vmem %s128, %s157 [#allocation2]
        %s159 = sshllo.u32 0, %s154
        loop: start=0, step=1, limit=1
        $region101: #{tpu_custom_call.1} parent=99 // loop_pre_header
          _
        $region102: #{tpu_custom_call.1} parent=99 // loop_header
          %s161 = sphi 0, %s165
          %p162 = scmp.ge.s32.totalorder %s161, 1
          %s166 = sphi %s156, %s156
          %s167 = sphi %s158, %s158
        $region103: #{tpu_custom_call.1} parent=99 // loop_header_branch
          %164 = sbr.rel (%p162) target = $region107
        $region104: #{tpu_custom_call.1} parent=99 // loop_body
          %v168 = vld [vmem:[%s166] sm:%s159]
          %169 = vst [vmem:[%s167] sm:%s159] %v168
        $region105: #{tpu_custom_call.1} parent=99 // loop_footer
          %s165 = sadd.s32 1, %s161
        $region106: #{tpu_custom_call.1} parent=99 // loop_footer_branch
          %160 = sbr.rel target = $region102
        $region107: #{tpu_custom_call.1} parent=99 // loop_exit
          _
      $region100: #{tpu_custom_call.1} parent=84 // pred_fallthru
        _
    $region85: #{tpu_custom_call.1} parent=1 // pred_fallthru
      _
    // Predicated region
    $region86: #{tpu_custom_call.1} parent=1 // pred_check
      %p135 = pneg %p131
    $region87: #{tpu_custom_call.1} parent=1 // pred_check_branch
      %137 = sbr.rel (%p135) target = $region89
    $region88: #{tpu_custom_call.1} parent=1 // pred_region
      %s138 = sshllo.u32 0, 1
      loop: start=0, step=1, limit=1
      $region90: #{tpu_custom_call.1} parent=88 // loop_pre_header
        _
      $region91: #{tpu_custom_call.1} parent=88 // loop_header
        %s140 = sphi 0, %s144
        %p141 = scmp.ge.s32.totalorder %s140, 1
        %s145 = sphi %s127, %s127
        %s146 = sphi %s128, %s128
      $region92: #{tpu_custom_call.1} parent=88 // loop_header_branch
        %143 = sbr.rel (%p141) target = $region96
      $region93: #{tpu_custom_call.1} parent=88 // loop_body
        %v147 = vld [vmem:[%s145] sm:%s138]
        %148 = vst [vmem:[%s146] sm:%s138] %v147
      $region94: #{tpu_custom_call.1} parent=88 // loop_footer
        %s144 = sadd.s32 1, %s140
      $region95: #{tpu_custom_call.1} parent=88 // loop_footer_branch
        %139 = sbr.rel target = $region91
      $region96: #{tpu_custom_call.1} parent=88 // loop_exit
        _
    $region89: #{tpu_custom_call.1} parent=1 // pred_fallthru
      _
    // Predicated region
    $region108: #{tpu_custom_call.1} parent=1 // pred_check
      _
    $region109: #{tpu_custom_call.1} parent=1 // pred_check_branch
      %172 = sbr.rel (0) target = $region111
    $region110: #{tpu_custom_call.1} parent=1 // pred_region
      %173 = vsyncadd %s129, 16
    $region111: #{tpu_custom_call.1} parent=1 // pred_fallthru
      _
    %s174 = sadd.s32 %s29, 3
    %s175 = sld [smem:[#allocation5 + %s174]]
    %s176 = scalar_lea.vmem %s6, %s175
    %s177 = scalar_lea.vmem [#allocation2], 3
    %s178 = scalar_lea.sflag [#allocation3], 3
    %p180 = scmp.lt.u32.totalorder 1, 8
    %p181 = pneg %p180
    // Predicated region
    $region112: #{tpu_custom_call.1} parent=1 // pred_check
      _
    $region113: #{tpu_custom_call.1} parent=1 // pred_check_branch
      %183 = sbr.rel (%p180) target = $region115
    $region114: #{tpu_custom_call.1} parent=1 // pred_region
      %s198 = sand.u32 1, 7
      %p199 = scmp.eq.s32.totalorder %s198, 0
      %p200 = pneg %p199
      // Predicated region
      $region127: #{tpu_custom_call.1} parent=114 // pred_check
        _
      $region128: #{tpu_custom_call.1} parent=114 // pred_check_branch
        %202 = sbr.rel (%p199) target = $region130
      $region129: #{tpu_custom_call.1} parent=114 // pred_region
        %s203 = sand.u32 1, 7
        %s204 = ssub.s32 1, %s203
        %s205 = scalar_lea.vmem %s176, %s204
        %s206 = ssub.s32 1, %s203
        %s207 = scalar_lea.vmem %s177, %s206 [#allocation2]
        %s208 = sshllo.u32 0, %s203
        loop: start=0, step=1, limit=1
        $region131: #{tpu_custom_call.1} parent=129 // loop_pre_header
          _
        $region132: #{tpu_custom_call.1} parent=129 // loop_header
          %s210 = sphi 0, %s214
          %p211 = scmp.ge.s32.totalorder %s210, 1
          %s215 = sphi %s205, %s205
          %s216 = sphi %s207, %s207
        $region133: #{tpu_custom_call.1} parent=129 // loop_header_branch
          %213 = sbr.rel (%p211) target = $region137
        $region134: #{tpu_custom_call.1} parent=129 // loop_body
          %v217 = vld [vmem:[%s215] sm:%s208]
          %218 = vst [vmem:[%s216] sm:%s208] %v217
        $region135: #{tpu_custom_call.1} parent=129 // loop_footer
          %s214 = sadd.s32 1, %s210
        $region136: #{tpu_custom_call.1} parent=129 // loop_footer_branch
          %209 = sbr.rel target = $region132
        $region137: #{tpu_custom_call.1} parent=129 // loop_exit
          _
      $region130: #{tpu_custom_call.1} parent=114 // pred_fallthru
        _
    $region115: #{tpu_custom_call.1} parent=1 // pred_fallthru
      _
    // Predicated region
    $region116: #{tpu_custom_call.1} parent=1 // pred_check
      %p184 = pneg %p180
    $region117: #{tpu_custom_call.1} parent=1 // pred_check_branch
      %186 = sbr.rel (%p184) target = $region119
    $region118: #{tpu_custom_call.1} parent=1 // pred_region
      %s187 = sshllo.u32 0, 1
      loop: start=0, step=1, limit=1
      $region120: #{tpu_custom_call.1} parent=118 // loop_pre_header
        _
      $region121: #{tpu_custom_call.1} parent=118 // loop_header
        %s189 = sphi 0, %s193
        %p190 = scmp.ge.s32.totalorder %s189, 1
        %s194 = sphi %s176, %s176
        %s195 = sphi %s177, %s177
      $region122: #{tpu_custom_call.1} parent=118 // loop_header_branch
        %192 = sbr.rel (%p190) target = $region126
      $region123: #{tpu_custom_call.1} parent=118 // loop_body
        %v196 = vld [vmem:[%s194] sm:%s187]
        %197 = vst [vmem:[%s195] sm:%s187] %v196
      $region124: #{tpu_custom_call.1} parent=118 // loop_footer
        %s193 = sadd.s32 1, %s189
      $region125: #{tpu_custom_call.1} parent=118 // loop_footer_branch
        %188 = sbr.rel target = $region121
      $region126: #{tpu_custom_call.1} parent=118 // loop_exit
        _
    $region119: #{tpu_custom_call.1} parent=1 // pred_fallthru
      _
    // Predicated region
    $region138: #{tpu_custom_call.1} parent=1 // pred_check
      _
    $region139: #{tpu_custom_call.1} parent=1 // pred_check_branch
      %221 = sbr.rel (0) target = $region141
    $region140: #{tpu_custom_call.1} parent=1 // pred_region
      %222 = vsyncadd %s178, 16
    $region141: #{tpu_custom_call.1} parent=1 // pred_fallthru
      _
    %s223 = sadd.s32 %s29, 4
    %s224 = sld [smem:[#allocation5 + %s223]]
    %s225 = scalar_lea.vmem %s6, %s224
    %s226 = scalar_lea.vmem [#allocation2], 4
    %s227 = scalar_lea.sflag [#allocation3], 4
    %p229 = scmp.lt.u32.totalorder 1, 8
    %p230 = pneg %p229
    // Predicated region
    $region142: #{tpu_custom_call.1} parent=1 // pred_check
      _
    $region143: #{tpu_custom_call.1} parent=1 // pred_check_branch
      %232 = sbr.rel (%p229) target = $region145
    $region144: #{tpu_custom_call.1} parent=1 // pred_region
      %s247 = sand.u32 1, 7
      %p248 = scmp.eq.s32.totalorder %s247, 0
      %p249 = pneg %p248
      // Predicated region
      $region157: #{tpu_custom_call.1} parent=144 // pred_check
        _
      $region158: #{tpu_custom_call.1} parent=144 // pred_check_branch
        %251 = sbr.rel (%p248) target = $region160
      $region159: #{tpu_custom_call.1} parent=144 // pred_region
        %s252 = sand.u32 1, 7
        %s253 = ssub.s32 1, %s252
        %s254 = scalar_lea.vmem %s225, %s253
        %s255 = ssub.s32 1, %s252
        %s256 = scalar_lea.vmem %s226, %s255 [#allocation2]
        %s257 = sshllo.u32 0, %s252
        loop: start=0, step=1, limit=1
        $region161: #{tpu_custom_call.1} parent=159 // loop_pre_header
          _
        $region162: #{tpu_custom_call.1} parent=159 // loop_header
          %s259 = sphi 0, %s263
          %p260 = scmp.ge.s32.totalorder %s259, 1
          %s264 = sphi %s254, %s254
          %s265 = sphi %s256, %s256
        $region163: #{tpu_custom_call.1} parent=159 // loop_header_branch
          %262 = sbr.rel (%p260) target = $region167
        $region164: #{tpu_custom_call.1} parent=159 // loop_body
          %v266 = vld [vmem:[%s264] sm:%s257]
          %267 = vst [vmem:[%s265] sm:%s257] %v266
        $region165: #{tpu_custom_call.1} parent=159 // loop_footer
          %s263 = sadd.s32 1, %s259
        $region166: #{tpu_custom_call.1} parent=159 // loop_footer_branch
          %258 = sbr.rel target = $region162
        $region167: #{tpu_custom_call.1} parent=159 // loop_exit
          _
      $region160: #{tpu_custom_call.1} parent=144 // pred_fallthru
        _
    $region145: #{tpu_custom_call.1} parent=1 // pred_fallthru
      _
    // Predicated region
    $region146: #{tpu_custom_call.1} parent=1 // pred_check
      %p233 = pneg %p229
    $region147: #{tpu_custom_call.1} parent=1 // pred_check_branch
      %235 = sbr.rel (%p233) target = $region149
    $region148: #{tpu_custom_call.1} parent=1 // pred_region
      %s236 = sshllo.u32 0, 1
      loop: start=0, step=1, limit=1
      $region150: #{tpu_custom_call.1} parent=148 // loop_pre_header
        _
      $region151: #{tpu_custom_call.1} parent=148 // loop_header
        %s238 = sphi 0, %s242
        %p239 = scmp.ge.s32.totalorder %s238, 1
        %s243 = sphi %s225, %s225
        %s244 = sphi %s226, %s226
      $region152: #{tpu_custom_call.1} parent=148 // loop_header_branch
        %241 = sbr.rel (%p239) target = $region156
      $region153: #{tpu_custom_call.1} parent=148 // loop_body
        %v245 = vld [vmem:[%s243] sm:%s236]
        %246 = vst [vmem:[%s244] sm:%s236] %v245
      $region154: #{tpu_custom_call.1} parent=148 // loop_footer
        %s242 = sadd.s32 1, %s238
      $region155: #{tpu_custom_call.1} parent=148 // loop_footer_branch
        %237 = sbr.rel target = $region151
      $region156: #{tpu_custom_call.1} parent=148 // loop_exit
        _
    $region149: #{tpu_custom_call.1} parent=1 // pred_fallthru
      _
    // Predicated region
    $region168: #{tpu_custom_call.1} parent=1 // pred_check
      _
    $region169: #{tpu_custom_call.1} parent=1 // pred_check_branch
      %270 = sbr.rel (0) target = $region171
    $region170: #{tpu_custom_call.1} parent=1 // pred_region
      %271 = vsyncadd %s227, 16
    $region171: #{tpu_custom_call.1} parent=1 // pred_fallthru
      _
    %s272 = sadd.s32 %s29, 5
    %s273 = sld [smem:[#allocation5 + %s272]]
    %s274 = scalar_lea.vmem %s6, %s273
    %s275 = scalar_lea.vmem [#allocation2], 5
    %s276 = scalar_lea.sflag [#allocation3], 5
    %p278 = scmp.lt.u32.totalorder 1, 8
    %p279 = pneg %p278
    // Predicated region
    $region172: #{tpu_custom_call.1} parent=1 // pred_check
      _
    $region173: #{tpu_custom_call.1} parent=1 // pred_check_branch
      %281 = sbr.rel (%p278) target = $region175
    $region174: #{tpu_custom_call.1} parent=1 // pred_region
      %s296 = sand.u32 1, 7
      %p297 = scmp.eq.s32.totalorder %s296, 0
      %p298 = pneg %p297
      // Predicated region
      $region187: #{tpu_custom_call.1} parent=174 // pred_check
        _
      $region188: #{tpu_custom_call.1} parent=174 // pred_check_branch
        %300 = sbr.rel (%p297) target = $region190
      $region189: #{tpu_custom_call.1} parent=174 // pred_region
        %s301 = sand.u32 1, 7
        %s302 = ssub.s32 1, %s301
        %s303 = scalar_lea.vmem %s274, %s302
        %s304 = ssub.s32 1, %s301
        %s305 = scalar_lea.vmem %s275, %s304 [#allocation2]
        %s306 = sshllo.u32 0, %s301
        loop: start=0, step=1, limit=1
        $region191: #{tpu_custom_call.1} parent=189 // loop_pre_header
          _
        $region192: #{tpu_custom_call.1} parent=189 // loop_header
          %s308 = sphi 0, %s312
          %p309 = scmp.ge.s32.totalorder %s308, 1
          %s313 = sphi %s303, %s303
          %s314 = sphi %s305, %s305
        $region193: #{tpu_custom_call.1} parent=189 // loop_header_branch
          %311 = sbr.rel (%p309) target = $region197
        $region194: #{tpu_custom_call.1} parent=189 // loop_body
          %v315 = vld [vmem:[%s313] sm:%s306]
          %316 = vst [vmem:[%s314] sm:%s306] %v315
        $region195: #{tpu_custom_call.1} parent=189 // loop_footer
          %s312 = sadd.s32 1, %s308
        $region196: #{tpu_custom_call.1} parent=189 // loop_footer_branch
          %307 = sbr.rel target = $region192
        $region197: #{tpu_custom_call.1} parent=189 // loop_exit
          _
      $region190: #{tpu_custom_call.1} parent=174 // pred_fallthru
        _
    $region175: #{tpu_custom_call.1} parent=1 // pred_fallthru
      _
    // Predicated region
    $region176: #{tpu_custom_call.1} parent=1 // pred_check
      %p282 = pneg %p278
    $region177: #{tpu_custom_call.1} parent=1 // pred_check_branch
      %284 = sbr.rel (%p282) target = $region179
    $region178: #{tpu_custom_call.1} parent=1 // pred_region
      %s285 = sshllo.u32 0, 1
      loop: start=0, step=1, limit=1
      $region180: #{tpu_custom_call.1} parent=178 // loop_pre_header
        _
      $region181: #{tpu_custom_call.1} parent=178 // loop_header
        %s287 = sphi 0, %s291
        %p288 = scmp.ge.s32.totalorder %s287, 1
        %s292 = sphi %s274, %s274
        %s293 = sphi %s275, %s275
      $region182: #{tpu_custom_call.1} parent=178 // loop_header_branch
        %290 = sbr.rel (%p288) target = $region186
      $region183: #{tpu_custom_call.1} parent=178 // loop_body
        %v294 = vld [vmem:[%s292] sm:%s285]
        %295 = vst [vmem:[%s293] sm:%s285] %v294
      $region184: #{tpu_custom_call.1} parent=178 // loop_footer
        %s291 = sadd.s32 1, %s287
      $region185: #{tpu_custom_call.1} parent=178 // loop_footer_branch
        %286 = sbr.rel target = $region181
      $region186: #{tpu_custom_call.1} parent=178 // loop_exit
        _
    $region179: #{tpu_custom_call.1} parent=1 // pred_fallthru
      _
    // Predicated region
    $region198: #{tpu_custom_call.1} parent=1 // pred_check
      _
    $region199: #{tpu_custom_call.1} parent=1 // pred_check_branch
      %319 = sbr.rel (0) target = $region201
    $region200: #{tpu_custom_call.1} parent=1 // pred_region
      %320 = vsyncadd %s276, 16
    $region201: #{tpu_custom_call.1} parent=1 // pred_fallthru
      _
    %s321 = sadd.s32 %s29, 6
    %s322 = sld [smem:[#allocation5 + %s321]]
    %s323 = scalar_lea.vmem %s6, %s322
    %s324 = scalar_lea.vmem [#allocation2], 6
    %s325 = scalar_lea.sflag [#allocation3], 6
    %p327 = scmp.lt.u32.totalorder 1, 8
    %p328 = pneg %p327
    // Predicated region
    $region202: #{tpu_custom_call.1} parent=1 // pred_check
      _
    $region203: #{tpu_custom_call.1} parent=1 // pred_check_branch
      %330 = sbr.rel (%p327) target = $region205
    $region204: #{tpu_custom_call.1} parent=1 // pred_region
      %s345 = sand.u32 1, 7
      %p346 = scmp.eq.s32.totalorder %s345, 0
      %p347 = pneg %p346
      // Predicated region
      $region217: #{tpu_custom_call.1} parent=204 // pred_check
        _
      $region218: #{tpu_custom_call.1} parent=204 // pred_check_branch
        %349 = sbr.rel (%p346) target = $region220
      $region219: #{tpu_custom_call.1} parent=204 // pred_region
        %s350 = sand.u32 1, 7
        %s351 = ssub.s32 1, %s350
        %s352 = scalar_lea.vmem %s323, %s351
        %s353 = ssub.s32 1, %s350
        %s354 = scalar_lea.vmem %s324, %s353 [#allocation2]
        %s355 = sshllo.u32 0, %s350
        loop: start=0, step=1, limit=1
        $region221: #{tpu_custom_call.1} parent=219 // loop_pre_header
          _
        $region222: #{tpu_custom_call.1} parent=219 // loop_header
          %s357 = sphi 0, %s361
          %p358 = scmp.ge.s32.totalorder %s357, 1
          %s362 = sphi %s352, %s352
          %s363 = sphi %s354, %s354
        $region223: #{tpu_custom_call.1} parent=219 // loop_header_branch
          %360 = sbr.rel (%p358) target = $region227
        $region224: #{tpu_custom_call.1} parent=219 // loop_body
          %v364 = vld [vmem:[%s362] sm:%s355]
          %365 = vst [vmem:[%s363] sm:%s355] %v364
        $region225: #{tpu_custom_call.1} parent=219 // loop_footer
          %s361 = sadd.s32 1, %s357
        $region226: #{tpu_custom_call.1} parent=219 // loop_footer_branch
          %356 = sbr.rel target = $region222
        $region227: #{tpu_custom_call.1} parent=219 // loop_exit
          _
      $region220: #{tpu_custom_call.1} parent=204 // pred_fallthru
        _
    $region205: #{tpu_custom_call.1} parent=1 // pred_fallthru
      _
    // Predicated region
    $region206: #{tpu_custom_call.1} parent=1 // pred_check
      %p331 = pneg %p327
    $region207: #{tpu_custom_call.1} parent=1 // pred_check_branch
      %333 = sbr.rel (%p331) target = $region209
    $region208: #{tpu_custom_call.1} parent=1 // pred_region
      %s334 = sshllo.u32 0, 1
      loop: start=0, step=1, limit=1
      $region210: #{tpu_custom_call.1} parent=208 // loop_pre_header
        _
      $region211: #{tpu_custom_call.1} parent=208 // loop_header
        %s336 = sphi 0, %s340
        %p337 = scmp.ge.s32.totalorder %s336, 1
        %s341 = sphi %s323, %s323
        %s342 = sphi %s324, %s324
      $region212: #{tpu_custom_call.1} parent=208 // loop_header_branch
        %339 = sbr.rel (%p337) target = $region216
      $region213: #{tpu_custom_call.1} parent=208 // loop_body
        %v343 = vld [vmem:[%s341] sm:%s334]
        %344 = vst [vmem:[%s342] sm:%s334] %v343
      $region214: #{tpu_custom_call.1} parent=208 // loop_footer
        %s340 = sadd.s32 1, %s336
      $region215: #{tpu_custom_call.1} parent=208 // loop_footer_branch
        %335 = sbr.rel target = $region211
      $region216: #{tpu_custom_call.1} parent=208 // loop_exit
        _
    $region209: #{tpu_custom_call.1} parent=1 // pred_fallthru
      _
    // Predicated region
    $region228: #{tpu_custom_call.1} parent=1 // pred_check
      _
    $region229: #{tpu_custom_call.1} parent=1 // pred_check_branch
      %368 = sbr.rel (0) target = $region231
    $region230: #{tpu_custom_call.1} parent=1 // pred_region
      %369 = vsyncadd %s325, 16
    $region231: #{tpu_custom_call.1} parent=1 // pred_fallthru
      _
    %s370 = sadd.s32 %s29, 7
    %s371 = sld [smem:[#allocation5 + %s370]]
    %s372 = scalar_lea.vmem %s6, %s371
    %s373 = scalar_lea.vmem [#allocation2], 7
    %s374 = scalar_lea.sflag [#allocation3], 7
    %p376 = scmp.lt.u32.totalorder 1, 8
    %p377 = pneg %p376
    // Predicated region
    $region232: #{tpu_custom_call.1} parent=1 // pred_check
      _
    $region233: #{tpu_custom_call.1} parent=1 // pred_check_branch
      %379 = sbr.rel (%p376) target = $region235
    $region234: #{tpu_custom_call.1} parent=1 // pred_region
      %s394 = sand.u32 1, 7
      %p395 = scmp.eq.s32.totalorder %s394, 0
      %p396 = pneg %p395
      // Predicated region
      $region247: #{tpu_custom_call.1} parent=234 // pred_check
        _
      $region248: #{tpu_custom_call.1} parent=234 // pred_check_branch
        %398 = sbr.rel (%p395) target = $region250
      $region249: #{tpu_custom_call.1} parent=234 // pred_region
        %s399 = sand.u32 1, 7
        %s400 = ssub.s32 1, %s399
        %s401 = scalar_lea.vmem %s372, %s400
        %s402 = ssub.s32 1, %s399
        %s403 = scalar_lea.vmem %s373, %s402 [#allocation2]
        %s404 = sshllo.u32 0, %s399
        loop: start=0, step=1, limit=1
        $region251: #{tpu_custom_call.1} parent=249 // loop_pre_header
          _
        $region252: #{tpu_custom_call.1} parent=249 // loop_header
          %s406 = sphi 0, %s410
          %p407 = scmp.ge.s32.totalorder %s406, 1
          %s411 = sphi %s401, %s401
          %s412 = sphi %s403, %s403
        $region253: #{tpu_custom_call.1} parent=249 // loop_header_branch
          %409 = sbr.rel (%p407) target = $region257
        $region254: #{tpu_custom_call.1} parent=249 // loop_body
          %v413 = vld [vmem:[%s411] sm:%s404]
          %414 = vst [vmem:[%s412] sm:%s404] %v413
        $region255: #{tpu_custom_call.1} parent=249 // loop_footer
          %s410 = sadd.s32 1, %s406
        $region256: #{tpu_custom_call.1} parent=249 // loop_footer_branch
          %405 = sbr.rel target = $region252
        $region257: #{tpu_custom_call.1} parent=249 // loop_exit
          _
      $region250: #{tpu_custom_call.1} parent=234 // pred_fallthru
        _
    $region235: #{tpu_custom_call.1} parent=1 // pred_fallthru
      _
    // Predicated region
    $region236: #{tpu_custom_call.1} parent=1 // pred_check
      %p380 = pneg %p376
    $region237: #{tpu_custom_call.1} parent=1 // pred_check_branch
      %382 = sbr.rel (%p380) target = $region239
    $region238: #{tpu_custom_call.1} parent=1 // pred_region
      %s383 = sshllo.u32 0, 1
      loop: start=0, step=1, limit=1
      $region240: #{tpu_custom_call.1} parent=238 // loop_pre_header
        _
      $region241: #{tpu_custom_call.1} parent=238 // loop_header
        %s385 = sphi 0, %s389
        %p386 = scmp.ge.s32.totalorder %s385, 1
        %s390 = sphi %s372, %s372
        %s391 = sphi %s373, %s373
      $region242: #{tpu_custom_call.1} parent=238 // loop_header_branch
        %388 = sbr.rel (%p386) target = $region246
      $region243: #{tpu_custom_call.1} parent=238 // loop_body
        %v392 = vld [vmem:[%s390] sm:%s383]
        %393 = vst [vmem:[%s391] sm:%s383] %v392
      $region244: #{tpu_custom_call.1} parent=238 // loop_footer
        %s389 = sadd.s32 1, %s385
      $region245: #{tpu_custom_call.1} parent=238 // loop_footer_branch
        %384 = sbr.rel target = $region241
      $region246: #{tpu_custom_call.1} parent=238 // loop_exit
        _
    $region239: #{tpu_custom_call.1} parent=1 // pred_fallthru
      _
    // Predicated region
    $region258: #{tpu_custom_call.1} parent=1 // pred_check
      _
    $region259: #{tpu_custom_call.1} parent=1 // pred_check_branch
      %417 = sbr.rel (0) target = $region261
    $region260: #{tpu_custom_call.1} parent=1 // pred_region
      %418 = vsyncadd %s374, 16
    $region261: #{tpu_custom_call.1} parent=1 // pred_fallthru
      _
    %s419 = sadd.s32 %s29, 8
    %s420 = sld [smem:[#allocation5 + %s419]]
    %s421 = scalar_lea.vmem %s6, %s420
    %s422 = scalar_lea.vmem [#allocation2], 8
    %s423 = scalar_lea.sflag [#allocation3], 8
    %p425 = scmp.lt.u32.totalorder 1, 8
    %p426 = pneg %p425
    // Predicated region
    $region262: #{tpu_custom_call.1} parent=1 // pred_check
      _
    $region263: #{tpu_custom_call.1} parent=1 // pred_check_branch
      %428 = sbr.rel (%p425) target = $region265
    $region264: #{tpu_custom_call.1} parent=1 // pred_region
      %s443 = sand.u32 1, 7
      %p444 = scmp.eq.s32.totalorder %s443, 0
      %p445 = pneg %p444
      // Predicated region
      $region277: #{tpu_custom_call.1} parent=264 // pred_check
        _
      $region278: #{tpu_custom_call.1} parent=264 // pred_check_branch
        %447 = sbr.rel (%p444) target = $region280
      $region279: #{tpu_custom_call.1} parent=264 // pred_region
        %s448 = sand.u32 1, 7
        %s449 = ssub.s32 1, %s448
        %s450 = scalar_lea.vmem %s421, %s449
        %s451 = ssub.s32 1, %s448
        %s452 = scalar_lea.vmem %s422, %s451 [#allocation2]
        %s453 = sshllo.u32 0, %s448
        loop: start=0, step=1, limit=1
        $region281: #{tpu_custom_call.1} parent=279 // loop_pre_header
          _
        $region282: #{tpu_custom_call.1} parent=279 // loop_header
          %s455 = sphi 0, %s459
          %p456 = scmp.ge.s32.totalorder %s455, 1
          %s460 = sphi %s450, %s450
          %s461 = sphi %s452, %s452
        $region283: #{tpu_custom_call.1} parent=279 // loop_header_branch
          %458 = sbr.rel (%p456) target = $region287
        $region284: #{tpu_custom_call.1} parent=279 // loop_body
          %v462 = vld [vmem:[%s460] sm:%s453]
          %463 = vst [vmem:[%s461] sm:%s453] %v462
        $region285: #{tpu_custom_call.1} parent=279 // loop_footer
          %s459 = sadd.s32 1, %s455
        $region286: #{tpu_custom_call.1} parent=279 // loop_footer_branch
          %454 = sbr.rel target = $region282
        $region287: #{tpu_custom_call.1} parent=279 // loop_exit
          _
      $region280: #{tpu_custom_call.1} parent=264 // pred_fallthru
        _
    $region265: #{tpu_custom_call.1} parent=1 // pred_fallthru
      _
    // Predicated region
    $region266: #{tpu_custom_call.1} parent=1 // pred_check
      %p429 = pneg %p425
    $region267: #{tpu_custom_call.1} parent=1 // pred_check_branch
      %431 = sbr.rel (%p429) target = $region269
    $region268: #{tpu_custom_call.1} parent=1 // pred_region
      %s432 = sshllo.u32 0, 1
      loop: start=0, step=1, limit=1
      $region270: #{tpu_custom_call.1} parent=268 // loop_pre_header
        _
      $region271: #{tpu_custom_call.1} parent=268 // loop_header
        %s434 = sphi 0, %s438
        %p435 = scmp.ge.s32.totalorder %s434, 1
        %s439 = sphi %s421, %s421
        %s440 = sphi %s422, %s422
      $region272: #{tpu_custom_call.1} parent=268 // loop_header_branch
        %437 = sbr.rel (%p435) target = $region276
      $region273: #{tpu_custom_call.1} parent=268 // loop_body
        %v441 = vld [vmem:[%s439] sm:%s432]
        %442 = vst [vmem:[%s440] sm:%s432] %v441
      $region274: #{tpu_custom_call.1} parent=268 // loop_footer
        %s438 = sadd.s32 1, %s434
      $region275: #{tpu_custom_call.1} parent=268 // loop_footer_branch
        %433 = sbr.rel target = $region271
      $region276: #{tpu_custom_call.1} parent=268 // loop_exit
        _
    $region269: #{tpu_custom_call.1} parent=1 // pred_fallthru
      _
    // Predicated region
    $region288: #{tpu_custom_call.1} parent=1 // pred_check
      _
    $region289: #{tpu_custom_call.1} parent=1 // pred_check_branch
      %466 = sbr.rel (0) target = $region291
    $region290: #{tpu_custom_call.1} parent=1 // pred_region
      %467 = vsyncadd %s423, 16
    $region291: #{tpu_custom_call.1} parent=1 // pred_fallthru
      _
    %s468 = sadd.s32 %s29, 9
    %s469 = sld [smem:[#allocation5 + %s468]]
    %s470 = scalar_lea.vmem %s6, %s469
    %s471 = scalar_lea.vmem [#allocation2], 9
    %s472 = scalar_lea.sflag [#allocation3], 9
    %p474 = scmp.lt.u32.totalorder 1, 8
    %p475 = pneg %p474
    // Predicated region
    $region292: #{tpu_custom_call.1} parent=1 // pred_check
      _
    $region293: #{tpu_custom_call.1} parent=1 // pred_check_branch
      %477 = sbr.rel (%p474) target = $region295
    $region294: #{tpu_custom_call.1} parent=1 // pred_region
      %s492 = sand.u32 1, 7
      %p493 = scmp.eq.s32.totalorder %s492, 0
      %p494 = pneg %p493
      // Predicated region
      $region307: #{tpu_custom_call.1} parent=294 // pred_check
        _
      $region308: #{tpu_custom_call.1} parent=294 // pred_check_branch
        %496 = sbr.rel (%p493) target = $region310
      $region309: #{tpu_custom_call.1} parent=294 // pred_region
        %s497 = sand.u32 1, 7
        %s498 = ssub.s32 1, %s497
        %s499 = scalar_lea.vmem %s470, %s498
        %s500 = ssub.s32 1, %s497
        %s501 = scalar_lea.vmem %s471, %s500 [#allocation2]
        %s502 = sshllo.u32 0, %s497
        loop: start=0, step=1, limit=1
        $region311: #{tpu_custom_call.1} parent=309 // loop_pre_header
          _
        $region312: #{tpu_custom_call.1} parent=309 // loop_header
          %s504 = sphi 0, %s508
          %p505 = scmp.ge.s32.totalorder %s504, 1
          %s509 = sphi %s499, %s499
          %s510 = sphi %s501, %s501
        $region313: #{tpu_custom_call.1} parent=309 // loop_header_branch
          %507 = sbr.rel (%p505) target = $region317
        $region314: #{tpu_custom_call.1} parent=309 // loop_body
          %v511 = vld [vmem:[%s509] sm:%s502]
          %512 = vst [vmem:[%s510] sm:%s502] %v511
        $region315: #{tpu_custom_call.1} parent=309 // loop_footer
          %s508 = sadd.s32 1, %s504
        $region316: #{tpu_custom_call.1} parent=309 // loop_footer_branch
          %503 = sbr.rel target = $region312
        $region317: #{tpu_custom_call.1} parent=309 // loop_exit
          _
      $region310: #{tpu_custom_call.1} parent=294 // pred_fallthru
        _
    $region295: #{tpu_custom_call.1} parent=1 // pred_fallthru
      _
    // Predicated region
    $region296: #{tpu_custom_call.1} parent=1 // pred_check
      %p478 = pneg %p474
    $region297: #{tpu_custom_call.1} parent=1 // pred_check_branch
      %480 = sbr.rel (%p478) target = $region299
    $region298: #{tpu_custom_call.1} parent=1 // pred_region
      %s481 = sshllo.u32 0, 1
      loop: start=0, step=1, limit=1
      $region300: #{tpu_custom_call.1} parent=298 // loop_pre_header
        _
      $region301: #{tpu_custom_call.1} parent=298 // loop_header
        %s483 = sphi 0, %s487
        %p484 = scmp.ge.s32.totalorder %s483, 1
        %s488 = sphi %s470, %s470
        %s489 = sphi %s471, %s471
      $region302: #{tpu_custom_call.1} parent=298 // loop_header_branch
        %486 = sbr.rel (%p484) target = $region306
      $region303: #{tpu_custom_call.1} parent=298 // loop_body
        %v490 = vld [vmem:[%s488] sm:%s481]
        %491 = vst [vmem:[%s489] sm:%s481] %v490
      $region304: #{tpu_custom_call.1} parent=298 // loop_footer
        %s487 = sadd.s32 1, %s483
      $region305: #{tpu_custom_call.1} parent=298 // loop_footer_branch
        %482 = sbr.rel target = $region301
      $region306: #{tpu_custom_call.1} parent=298 // loop_exit
        _
    $region299: #{tpu_custom_call.1} parent=1 // pred_fallthru
      _
    // Predicated region
    $region318: #{tpu_custom_call.1} parent=1 // pred_check
      _
    $region319: #{tpu_custom_call.1} parent=1 // pred_check_branch
      %515 = sbr.rel (0) target = $region321
    $region320: #{tpu_custom_call.1} parent=1 // pred_region
      %516 = vsyncadd %s472, 16
    $region321: #{tpu_custom_call.1} parent=1 // pred_fallthru
      _
    %s517 = sadd.s32 %s29, 10
    %s518 = sld [smem:[#allocation5 + %s517]]
    %s519 = scalar_lea.vmem %s6, %s518
    %s520 = scalar_lea.vmem [#allocation2], 10
    %s521 = scalar_lea.sflag [#allocation3], 10
    %p523 = scmp.lt.u32.totalorder 1, 8
    %p524 = pneg %p523
    // Predicated region
    $region322: #{tpu_custom_call.1} parent=1 // pred_check
      _
    $region323: #{tpu_custom_call.1} parent=1 // pred_check_branch
      %526 = sbr.rel (%p523) target = $region325
    $region324: #{tpu_custom_call.1} parent=1 // pred_region
      %s541 = sand.u32 1, 7
      %p542 = scmp.eq.s32.totalorder %s541, 0
      %p543 = pneg %p542
      // Predicated region
      $region337: #{tpu_custom_call.1} parent=324 // pred_check
        _
      $region338: #{tpu_custom_call.1} parent=324 // pred_check_branch
        %545 = sbr.rel (%p542) target = $region340
      $region339: #{tpu_custom_call.1} parent=324 // pred_region
        %s546 = sand.u32 1, 7
        %s547 = ssub.s32 1, %s546
        %s548 = scalar_lea.vmem %s519, %s547
        %s549 = ssub.s32 1, %s546
        %s550 = scalar_lea.vmem %s520, %s549 [#allocation2]
        %s551 = sshllo.u32 0, %s546
        loop: start=0, step=1, limit=1
        $region341: #{tpu_custom_call.1} parent=339 // loop_pre_header
          _
        $region342: #{tpu_custom_call.1} parent=339 // loop_header
          %s553 = sphi 0, %s557
          %p554 = scmp.ge.s32.totalorder %s553, 1
          %s558 = sphi %s548, %s548
          %s559 = sphi %s550, %s550
        $region343: #{tpu_custom_call.1} parent=339 // loop_header_branch
          %556 = sbr.rel (%p554) target = $region347
        $region344: #{tpu_custom_call.1} parent=339 // loop_body
          %v560 = vld [vmem:[%s558] sm:%s551]
          %561 = vst [vmem:[%s559] sm:%s551] %v560
        $region345: #{tpu_custom_call.1} parent=339 // loop_footer
          %s557 = sadd.s32 1, %s553
        $region346: #{tpu_custom_call.1} parent=339 // loop_footer_branch
          %552 = sbr.rel target = $region342
        $region347: #{tpu_custom_call.1} parent=339 // loop_exit
          _
      $region340: #{tpu_custom_call.1} parent=324 // pred_fallthru
        _
    $region325: #{tpu_custom_call.1} parent=1 // pred_fallthru
      _
    // Predicated region
    $region326: #{tpu_custom_call.1} parent=1 // pred_check
      %p527 = pneg %p523
    $region327: #{tpu_custom_call.1} parent=1 // pred_check_branch
      %529 = sbr.rel (%p527) target = $region329
    $region328: #{tpu_custom_call.1} parent=1 // pred_region
      %s530 = sshllo.u32 0, 1
      loop: start=0, step=1, limit=1
      $region330: #{tpu_custom_call.1} parent=328 // loop_pre_header
        _
      $region331: #{tpu_custom_call.1} parent=328 // loop_header
        %s532 = sphi 0, %s536
        %p533 = scmp.ge.s32.totalorder %s532, 1
        %s537 = sphi %s519, %s519
        %s538 = sphi %s520, %s520
      $region332: #{tpu_custom_call.1} parent=328 // loop_header_branch
        %535 = sbr.rel (%p533) target = $region336
      $region333: #{tpu_custom_call.1} parent=328 // loop_body
        %v539 = vld [vmem:[%s537] sm:%s530]
        %540 = vst [vmem:[%s538] sm:%s530] %v539
      $region334: #{tpu_custom_call.1} parent=328 // loop_footer
        %s536 = sadd.s32 1, %s532
      $region335: #{tpu_custom_call.1} parent=328 // loop_footer_branch
        %531 = sbr.rel target = $region331
      $region336: #{tpu_custom_call.1} parent=328 // loop_exit
        _
    $region329: #{tpu_custom_call.1} parent=1 // pred_fallthru
      _
    // Predicated region
    $region348: #{tpu_custom_call.1} parent=1 // pred_check
      _
    $region349: #{tpu_custom_call.1} parent=1 // pred_check_branch
      %564 = sbr.rel (0) target = $region351
    $region350: #{tpu_custom_call.1} parent=1 // pred_region
      %565 = vsyncadd %s521, 16
    $region351: #{tpu_custom_call.1} parent=1 // pred_fallthru
      _
    %s566 = sadd.s32 %s29, 11
    %s567 = sld [smem:[#allocation5 + %s566]]
    %s568 = scalar_lea.vmem %s6, %s567
    %s569 = scalar_lea.vmem [#allocation2], 11
    %s570 = scalar_lea.sflag [#allocation3], 11
    %p572 = scmp.lt.u32.totalorder 1, 8
    %p573 = pneg %p572
    // Predicated region
    $region352: #{tpu_custom_call.1} parent=1 // pred_check
      _
    $region353: #{tpu_custom_call.1} parent=1 // pred_check_branch
      %575 = sbr.rel (%p572) target = $region355
    $region354: #{tpu_custom_call.1} parent=1 // pred_region
      %s590 = sand.u32 1, 7
      %p591 = scmp.eq.s32.totalorder %s590, 0
      %p592 = pneg %p591
      // Predicated region
      $region367: #{tpu_custom_call.1} parent=354 // pred_check
        _
      $region368: #{tpu_custom_call.1} parent=354 // pred_check_branch
        %594 = sbr.rel (%p591) target = $region370
      $region369: #{tpu_custom_call.1} parent=354 // pred_region
        %s595 = sand.u32 1, 7
        %s596 = ssub.s32 1, %s595
        %s597 = scalar_lea.vmem %s568, %s596
        %s598 = ssub.s32 1, %s595
        %s599 = scalar_lea.vmem %s569, %s598 [#allocation2]
        %s600 = sshllo.u32 0, %s595
        loop: start=0, step=1, limit=1
        $region371: #{tpu_custom_call.1} parent=369 // loop_pre_header
          _
        $region372: #{tpu_custom_call.1} parent=369 // loop_header
          %s602 = sphi 0, %s606
          %p603 = scmp.ge.s32.totalorder %s602, 1
          %s607 = sphi %s597, %s597
          %s608 = sphi %s599, %s599
        $region373: #{tpu_custom_call.1} parent=369 // loop_header_branch
          %605 = sbr.rel (%p603) target = $region377
        $region374: #{tpu_custom_call.1} parent=369 // loop_body
          %v609 = vld [vmem:[%s607] sm:%s600]
          %610 = vst [vmem:[%s608] sm:%s600] %v609
        $region375: #{tpu_custom_call.1} parent=369 // loop_footer
          %s606 = sadd.s32 1, %s602
        $region376: #{tpu_custom_call.1} parent=369 // loop_footer_branch
          %601 = sbr.rel target = $region372
        $region377: #{tpu_custom_call.1} parent=369 // loop_exit
          _
      $region370: #{tpu_custom_call.1} parent=354 // pred_fallthru
        _
    $region355: #{tpu_custom_call.1} parent=1 // pred_fallthru
      _
    // Predicated region
    $region356: #{tpu_custom_call.1} parent=1 // pred_check
      %p576 = pneg %p572
    $region357: #{tpu_custom_call.1} parent=1 // pred_check_branch
      %578 = sbr.rel (%p576) target = $region359
    $region358: #{tpu_custom_call.1} parent=1 // pred_region
      %s579 = sshllo.u32 0, 1
      loop: start=0, step=1, limit=1
      $region360: #{tpu_custom_call.1} parent=358 // loop_pre_header
        _
      $region361: #{tpu_custom_call.1} parent=358 // loop_header
        %s581 = sphi 0, %s585
        %p582 = scmp.ge.s32.totalorder %s581, 1
        %s586 = sphi %s568, %s568
        %s587 = sphi %s569, %s569
      $region362: #{tpu_custom_call.1} parent=358 // loop_header_branch
        %584 = sbr.rel (%p582) target = $region366
      $region363: #{tpu_custom_call.1} parent=358 // loop_body
        %v588 = vld [vmem:[%s586] sm:%s579]
        %589 = vst [vmem:[%s587] sm:%s579] %v588
      $region364: #{tpu_custom_call.1} parent=358 // loop_footer
        %s585 = sadd.s32 1, %s581
      $region365: #{tpu_custom_call.1} parent=358 // loop_footer_branch
        %580 = sbr.rel target = $region361
      $region366: #{tpu_custom_call.1} parent=358 // loop_exit
        _
    $region359: #{tpu_custom_call.1} parent=1 // pred_fallthru
      _
    // Predicated region
    $region378: #{tpu_custom_call.1} parent=1 // pred_check
      _
    $region379: #{tpu_custom_call.1} parent=1 // pred_check_branch
      %613 = sbr.rel (0) target = $region381
    $region380: #{tpu_custom_call.1} parent=1 // pred_region
      %614 = vsyncadd %s570, 16
    $region381: #{tpu_custom_call.1} parent=1 // pred_fallthru
      _
    %s615 = sadd.s32 %s29, 12
    %s616 = sld [smem:[#allocation5 + %s615]]
    %s617 = scalar_lea.vmem %s6, %s616
    %s618 = scalar_lea.vmem [#allocation2], 12
    %s619 = scalar_lea.sflag [#allocation3], 12
    %p621 = scmp.lt.u32.totalorder 1, 8
    %p622 = pneg %p621
    // Predicated region
    $region382: #{tpu_custom_call.1} parent=1 // pred_check
      _
    $region383: #{tpu_custom_call.1} parent=1 // pred_check_branch
      %624 = sbr.rel (%p621) target = $region385
    $region384: #{tpu_custom_call.1} parent=1 // pred_region
      %s639 = sand.u32 1, 7
      %p640 = scmp.eq.s32.totalorder %s639, 0
      %p641 = pneg %p640
      // Predicated region
      $region397: #{tpu_custom_call.1} parent=384 // pred_check
        _
      $region398: #{tpu_custom_call.1} parent=384 // pred_check_branch
        %643 = sbr.rel (%p640) target = $region400
      $region399: #{tpu_custom_call.1} parent=384 // pred_region
        %s644 = sand.u32 1, 7
        %s645 = ssub.s32 1, %s644
        %s646 = scalar_lea.vmem %s617, %s645
        %s647 = ssub.s32 1, %s644
        %s648 = scalar_lea.vmem %s618, %s647 [#allocation2]
        %s649 = sshllo.u32 0, %s644
        loop: start=0, step=1, limit=1
        $region401: #{tpu_custom_call.1} parent=399 // loop_pre_header
          _
        $region402: #{tpu_custom_call.1} parent=399 // loop_header
          %s651 = sphi 0, %s655
          %p652 = scmp.ge.s32.totalorder %s651, 1
          %s656 = sphi %s646, %s646
          %s657 = sphi %s648, %s648
        $region403: #{tpu_custom_call.1} parent=399 // loop_header_branch
          %654 = sbr.rel (%p652) target = $region407
        $region404: #{tpu_custom_call.1} parent=399 // loop_body
          %v658 = vld [vmem:[%s656] sm:%s649]
          %659 = vst [vmem:[%s657] sm:%s649] %v658
        $region405: #{tpu_custom_call.1} parent=399 // loop_footer
          %s655 = sadd.s32 1, %s651
        $region406: #{tpu_custom_call.1} parent=399 // loop_footer_branch
          %650 = sbr.rel target = $region402
        $region407: #{tpu_custom_call.1} parent=399 // loop_exit
          _
      $region400: #{tpu_custom_call.1} parent=384 // pred_fallthru
        _
    $region385: #{tpu_custom_call.1} parent=1 // pred_fallthru
      _
    // Predicated region
    $region386: #{tpu_custom_call.1} parent=1 // pred_check
      %p625 = pneg %p621
    $region387: #{tpu_custom_call.1} parent=1 // pred_check_branch
      %627 = sbr.rel (%p625) target = $region389
    $region388: #{tpu_custom_call.1} parent=1 // pred_region
      %s628 = sshllo.u32 0, 1
      loop: start=0, step=1, limit=1
      $region390: #{tpu_custom_call.1} parent=388 // loop_pre_header
        _
      $region391: #{tpu_custom_call.1} parent=388 // loop_header
        %s630 = sphi 0, %s634
        %p631 = scmp.ge.s32.totalorder %s630, 1
        %s635 = sphi %s617, %s617
        %s636 = sphi %s618, %s618
      $region392: #{tpu_custom_call.1} parent=388 // loop_header_branch
        %633 = sbr.rel (%p631) target = $region396
      $region393: #{tpu_custom_call.1} parent=388 // loop_body
        %v637 = vld [vmem:[%s635] sm:%s628]
        %638 = vst [vmem:[%s636] sm:%s628] %v637
      $region394: #{tpu_custom_call.1} parent=388 // loop_footer
        %s634 = sadd.s32 1, %s630
      $region395: #{tpu_custom_call.1} parent=388 // loop_footer_branch
        %629 = sbr.rel target = $region391
      $region396: #{tpu_custom_call.1} parent=388 // loop_exit
        _
    $region389: #{tpu_custom_call.1} parent=1 // pred_fallthru
      _
    // Predicated region
    $region408: #{tpu_custom_call.1} parent=1 // pred_check
      _
    $region409: #{tpu_custom_call.1} parent=1 // pred_check_branch
      %662 = sbr.rel (0) target = $region411
    $region410: #{tpu_custom_call.1} parent=1 // pred_region
      %663 = vsyncadd %s619, 16
    $region411: #{tpu_custom_call.1} parent=1 // pred_fallthru
      _
    %s664 = sadd.s32 %s29, 13
    %s665 = sld [smem:[#allocation5 + %s664]]
    %s666 = scalar_lea.vmem %s6, %s665
    %s667 = scalar_lea.vmem [#allocation2], 13
    %s668 = scalar_lea.sflag [#allocation3], 13
    %p670 = scmp.lt.u32.totalorder 1, 8
    %p671 = pneg %p670
    // Predicated region
    $region412: #{tpu_custom_call.1} parent=1 // pred_check
      _
    $region413: #{tpu_custom_call.1} parent=1 // pred_check_branch
      %673 = sbr.rel (%p670) target = $region415
    $region414: #{tpu_custom_call.1} parent=1 // pred_region
      %s688 = sand.u32 1, 7
      %p689 = scmp.eq.s32.totalorder %s688, 0
      %p690 = pneg %p689
      // Predicated region
      $region427: #{tpu_custom_call.1} parent=414 // pred_check
        _
      $region428: #{tpu_custom_call.1} parent=414 // pred_check_branch
        %692 = sbr.rel (%p689) target = $region430
      $region429: #{tpu_custom_call.1} parent=414 // pred_region
        %s693 = sand.u32 1, 7
        %s694 = ssub.s32 1, %s693
        %s695 = scalar_lea.vmem %s666, %s694
        %s696 = ssub.s32 1, %s693
        %s697 = scalar_lea.vmem %s667, %s696 [#allocation2]
        %s698 = sshllo.u32 0, %s693
        loop: start=0, step=1, limit=1
        $region431: #{tpu_custom_call.1} parent=429 // loop_pre_header
          _
        $region432: #{tpu_custom_call.1} parent=429 // loop_header
          %s700 = sphi 0, %s704
          %p701 = scmp.ge.s32.totalorder %s700, 1
          %s705 = sphi %s695, %s695
          %s706 = sphi %s697, %s697
        $region433: #{tpu_custom_call.1} parent=429 // loop_header_branch
          %703 = sbr.rel (%p701) target = $region437
        $region434: #{tpu_custom_call.1} parent=429 // loop_body
          %v707 = vld [vmem:[%s705] sm:%s698]
          %708 = vst [vmem:[%s706] sm:%s698] %v707
        $region435: #{tpu_custom_call.1} parent=429 // loop_footer
          %s704 = sadd.s32 1, %s700
        $region436: #{tpu_custom_call.1} parent=429 // loop_footer_branch
          %699 = sbr.rel target = $region432
        $region437: #{tpu_custom_call.1} parent=429 // loop_exit
          _
      $region430: #{tpu_custom_call.1} parent=414 // pred_fallthru
        _
    $region415: #{tpu_custom_call.1} parent=1 // pred_fallthru
      _
    // Predicated region
    $region416: #{tpu_custom_call.1} parent=1 // pred_check
      %p674 = pneg %p670
    $region417: #{tpu_custom_call.1} parent=1 // pred_check_branch
      %676 = sbr.rel (%p674) target = $region419
    $region418: #{tpu_custom_call.1} parent=1 // pred_region
      %s677 = sshllo.u32 0, 1
      loop: start=0, step=1, limit=1
      $region420: #{tpu_custom_call.1} parent=418 // loop_pre_header
        _
      $region421: #{tpu_custom_call.1} parent=418 // loop_header
        %s679 = sphi 0, %s683
        %p680 = scmp.ge.s32.totalorder %s679, 1
        %s684 = sphi %s666, %s666
        %s685 = sphi %s667, %s667
      $region422: #{tpu_custom_call.1} parent=418 // loop_header_branch
        %682 = sbr.rel (%p680) target = $region426
      $region423: #{tpu_custom_call.1} parent=418 // loop_body
        %v686 = vld [vmem:[%s684] sm:%s677]
        %687 = vst [vmem:[%s685] sm:%s677] %v686
      $region424: #{tpu_custom_call.1} parent=418 // loop_footer
        %s683 = sadd.s32 1, %s679
      $region425: #{tpu_custom_call.1} parent=418 // loop_footer_branch
        %678 = sbr.rel target = $region421
      $region426: #{tpu_custom_call.1} parent=418 // loop_exit
        _
    $region419: #{tpu_custom_call.1} parent=1 // pred_fallthru
      _
    // Predicated region
    $region438: #{tpu_custom_call.1} parent=1 // pred_check
      _
    $region439: #{tpu_custom_call.1} parent=1 // pred_check_branch
      %711 = sbr.rel (0) target = $region441
    $region440: #{tpu_custom_call.1} parent=1 // pred_region
      %712 = vsyncadd %s668, 16
    $region441: #{tpu_custom_call.1} parent=1 // pred_fallthru
      _
    %s713 = sadd.s32 %s29, 14
    %s714 = sld [smem:[#allocation5 + %s713]]
    %s715 = scalar_lea.vmem %s6, %s714
    %s716 = scalar_lea.vmem [#allocation2], 14
    %s717 = scalar_lea.sflag [#allocation3], 14
    %p719 = scmp.lt.u32.totalorder 1, 8
    %p720 = pneg %p719
    // Predicated region
    $region442: #{tpu_custom_call.1} parent=1 // pred_check
      _
    $region443: #{tpu_custom_call.1} parent=1 // pred_check_branch
      %722 = sbr.rel (%p719) target = $region445
    $region444: #{tpu_custom_call.1} parent=1 // pred_region
      %s737 = sand.u32 1, 7
      %p738 = scmp.eq.s32.totalorder %s737, 0
      %p739 = pneg %p738
      // Predicated region
      $region457: #{tpu_custom_call.1} parent=444 // pred_check
        _
      $region458: #{tpu_custom_call.1} parent=444 // pred_check_branch
        %741 = sbr.rel (%p738) target = $region460
      $region459: #{tpu_custom_call.1} parent=444 // pred_region
        %s742 = sand.u32 1, 7
        %s743 = ssub.s32 1, %s742
        %s744 = scalar_lea.vmem %s715, %s743
        %s745 = ssub.s32 1, %s742
        %s746 = scalar_lea.vmem %s716, %s745 [#allocation2]
        %s747 = sshllo.u32 0, %s742
        loop: start=0, step=1, limit=1
        $region461: #{tpu_custom_call.1} parent=459 // loop_pre_header
          _
        $region462: #{tpu_custom_call.1} parent=459 // loop_header
          %s749 = sphi 0, %s753
          %p750 = scmp.ge.s32.totalorder %s749, 1
          %s754 = sphi %s744, %s744
          %s755 = sphi %s746, %s746
        $region463: #{tpu_custom_call.1} parent=459 // loop_header_branch
          %752 = sbr.rel (%p750) target = $region467
        $region464: #{tpu_custom_call.1} parent=459 // loop_body
          %v756 = vld [vmem:[%s754] sm:%s747]
          %757 = vst [vmem:[%s755] sm:%s747] %v756
        $region465: #{tpu_custom_call.1} parent=459 // loop_footer
          %s753 = sadd.s32 1, %s749
        $region466: #{tpu_custom_call.1} parent=459 // loop_footer_branch
          %748 = sbr.rel target = $region462
        $region467: #{tpu_custom_call.1} parent=459 // loop_exit
          _
      $region460: #{tpu_custom_call.1} parent=444 // pred_fallthru
        _
    $region445: #{tpu_custom_call.1} parent=1 // pred_fallthru
      _
    // Predicated region
    $region446: #{tpu_custom_call.1} parent=1 // pred_check
      %p723 = pneg %p719
    $region447: #{tpu_custom_call.1} parent=1 // pred_check_branch
      %725 = sbr.rel (%p723) target = $region449
    $region448: #{tpu_custom_call.1} parent=1 // pred_region
      %s726 = sshllo.u32 0, 1
      loop: start=0, step=1, limit=1
      $region450: #{tpu_custom_call.1} parent=448 // loop_pre_header
        _
      $region451: #{tpu_custom_call.1} parent=448 // loop_header
        %s728 = sphi 0, %s732
        %p729 = scmp.ge.s32.totalorder %s728, 1
        %s733 = sphi %s715, %s715
        %s734 = sphi %s716, %s716
      $region452: #{tpu_custom_call.1} parent=448 // loop_header_branch
        %731 = sbr.rel (%p729) target = $region456
      $region453: #{tpu_custom_call.1} parent=448 // loop_body
        %v735 = vld [vmem:[%s733] sm:%s726]
        %736 = vst [vmem:[%s734] sm:%s726] %v735
      $region454: #{tpu_custom_call.1} parent=448 // loop_footer
        %s732 = sadd.s32 1, %s728
      $region455: #{tpu_custom_call.1} parent=448 // loop_footer_branch
        %727 = sbr.rel target = $region451
      $region456: #{tpu_custom_call.1} parent=448 // loop_exit
        _
    $region449: #{tpu_custom_call.1} parent=1 // pred_fallthru
      _
    // Predicated region
    $region468: #{tpu_custom_call.1} parent=1 // pred_check
      _
    $region469: #{tpu_custom_call.1} parent=1 // pred_check_branch
      %760 = sbr.rel (0) target = $region471
    $region470: #{tpu_custom_call.1} parent=1 // pred_region
      %761 = vsyncadd %s717, 16
    $region471: #{tpu_custom_call.1} parent=1 // pred_fallthru
      _
    %s762 = sadd.s32 %s29, 15
    %s763 = sld [smem:[#allocation5 + %s762]]
    %s764 = scalar_lea.vmem %s6, %s763
    %s765 = scalar_lea.vmem [#allocation2], 15
    %s766 = scalar_lea.sflag [#allocation3], 15
    %p768 = scmp.lt.u32.totalorder 1, 8
    %p769 = pneg %p768
    // Predicated region
    $region472: #{tpu_custom_call.1} parent=1 // pred_check
      _
    $region473: #{tpu_custom_call.1} parent=1 // pred_check_branch
      %771 = sbr.rel (%p768) target = $region475
    $region474: #{tpu_custom_call.1} parent=1 // pred_region
      %s786 = sand.u32 1, 7
      %p787 = scmp.eq.s32.totalorder %s786, 0
      %p788 = pneg %p787
      // Predicated region
      $region487: #{tpu_custom_call.1} parent=474 // pred_check
        _
      $region488: #{tpu_custom_call.1} parent=474 // pred_check_branch
        %790 = sbr.rel (%p787) target = $region490
      $region489: #{tpu_custom_call.1} parent=474 // pred_region
        %s791 = sand.u32 1, 7
        %s792 = ssub.s32 1, %s791
        %s793 = scalar_lea.vmem %s764, %s792
        %s794 = ssub.s32 1, %s791
        %s795 = scalar_lea.vmem %s765, %s794 [#allocation2]
        %s796 = sshllo.u32 0, %s791
        loop: start=0, step=1, limit=1
        $region491: #{tpu_custom_call.1} parent=489 // loop_pre_header
          _
        $region492: #{tpu_custom_call.1} parent=489 // loop_header
          %s798 = sphi 0, %s802
          %p799 = scmp.ge.s32.totalorder %s798, 1
          %s803 = sphi %s793, %s793
          %s804 = sphi %s795, %s795
        $region493: #{tpu_custom_call.1} parent=489 // loop_header_branch
          %801 = sbr.rel (%p799) target = $region497
        $region494: #{tpu_custom_call.1} parent=489 // loop_body
          %v805 = vld [vmem:[%s803] sm:%s796]
          %806 = vst [vmem:[%s804] sm:%s796] %v805
        $region495: #{tpu_custom_call.1} parent=489 // loop_footer
          %s802 = sadd.s32 1, %s798
        $region496: #{tpu_custom_call.1} parent=489 // loop_footer_branch
          %797 = sbr.rel target = $region492
        $region497: #{tpu_custom_call.1} parent=489 // loop_exit
          _
      $region490: #{tpu_custom_call.1} parent=474 // pred_fallthru
        _
    $region475: #{tpu_custom_call.1} parent=1 // pred_fallthru
      _
    // Predicated region
    $region476: #{tpu_custom_call.1} parent=1 // pred_check
      %p772 = pneg %p768
    $region477: #{tpu_custom_call.1} parent=1 // pred_check_branch
      %774 = sbr.rel (%p772) target = $region479
    $region478: #{tpu_custom_call.1} parent=1 // pred_region
      %s775 = sshllo.u32 0, 1
      loop: start=0, step=1, limit=1
      $region480: #{tpu_custom_call.1} parent=478 // loop_pre_header
        _
      $region481: #{tpu_custom_call.1} parent=478 // loop_header
        %s777 = sphi 0, %s781
        %p778 = scmp.ge.s32.totalorder %s777, 1
        %s782 = sphi %s764, %s764
        %s783 = sphi %s765, %s765
      $region482: #{tpu_custom_call.1} parent=478 // loop_header_branch
        %780 = sbr.rel (%p778) target = $region486
      $region483: #{tpu_custom_call.1} parent=478 // loop_body
        %v784 = vld [vmem:[%s782] sm:%s775]
        %785 = vst [vmem:[%s783] sm:%s775] %v784
      $region484: #{tpu_custom_call.1} parent=478 // loop_footer
        %s781 = sadd.s32 1, %s777
      $region485: #{tpu_custom_call.1} parent=478 // loop_footer_branch
        %776 = sbr.rel target = $region481
      $region486: #{tpu_custom_call.1} parent=478 // loop_exit
        _
    $region479: #{tpu_custom_call.1} parent=1 // pred_fallthru
      _
    // Predicated region
    $region498: #{tpu_custom_call.1} parent=1 // pred_check
      _
    $region499: #{tpu_custom_call.1} parent=1 // pred_check_branch
      %809 = sbr.rel (0) target = $region501
    $region500: #{tpu_custom_call.1} parent=1 // pred_region
      %810 = vsyncadd %s766, 16
    $region501: #{tpu_custom_call.1} parent=1 // pred_fallthru
      _
    %v811 = vld [vmem:[%s2] sm:$0xff]
    %v812 = vld [vmem:[%s2 + $0x8] sm:$0xff]
    %v813 = vld [vmem:[%s1] sm:$0xff]
    %v814 = vld [vmem:[%s1 + $0x8] sm:$0xff]
    %vm815 = vcmp.eq.s32.totalorder %v813, 0
    %vm816 = vcmp.eq.s32.totalorder %v814, 0
    %v817 = vsel %vm815, 1, 0
    %v818 = vsel %vm816, 1, 0
    %v819 = vcvt.s32.f32 %v817
    %v820 = vcvt.s32.f32 %v818
    %v821 = vld [vmem:[%s3] sm:$0x1]
    %823 = vset.pattern.permute.xlu0 0
    %824 = vperm.xlu0 %823, %v819
    %v825 = vpop.permute.xlu0 %824
    %828 = vset.pattern.permute.xlu0 0
    %829 = vperm.xlu0 %828, %v820
    %v830 = vpop.permute.xlu0 %829
    %v832 = vlaneseq
    %v833 = vshrl.u32 %v832, 7
    %v834 = vsub.s32 0, %v833
    %v835 = vrot.slane %v821, %v834
    %v836 = vmul.f32 %v825, %v835
    %v837 = vmul.f32 %v830, %v835
    %v838 = vadd.f32 %v811, %v836
    %v839 = vadd.f32 %v812, %v837
    %vm840 = vcmp.eq.s32.totalorder %v813, 1
    %vm841 = vcmp.eq.s32.totalorder %v814, 1
    %v842 = vsel %vm840, 1, 0
    %v843 = vsel %vm841, 1, 0
    %v844 = vcvt.s32.f32 %v842
    %v845 = vcvt.s32.f32 %v843
    %v846 = vld [vmem:[%s3 + $0x1] sm:$0x1]
    %848 = vset.pattern.permute.xlu0 0
    %849 = vperm.xlu0 %848, %v844
    %v850 = vpop.permute.xlu0 %849
    %853 = vset.pattern.permute.xlu0 0
    %854 = vperm.xlu0 %853, %v845
    %v855 = vpop.permute.xlu0 %854
    %v857 = vlaneseq
    %v858 = vshrl.u32 %v857, 7
    %v859 = vsub.s32 0, %v858
    %v860 = vrot.slane %v846, %v859
    %v861 = vmul.f32 %v850, %v860
    %v862 = vmul.f32 %v855, %v860
    %v863 = vadd.f32 %v838, %v861
    %v864 = vadd.f32 %v839, %v862
    %s865 = smul.u32 1, 1
    %s866 = sshll.u32 %s865, 4
    %867 = dma.done [#allocation3], %s866
    %s868 = sshll.u32 %s865, 4
    %869 = dma.done %s80, %s868
    %s870 = sshll.u32 %s865, 4
    %871 = dma.done %s129, %s870
    %s872 = sshll.u32 %s865, 4
    %873 = dma.done %s178, %s872
    %s874 = sshll.u32 %s865, 4
    %875 = dma.done %s227, %s874
    %s876 = sshll.u32 %s865, 4
    %877 = dma.done %s276, %s876
    %s878 = sshll.u32 %s865, 4
    %879 = dma.done %s325, %s878
    %s880 = sshll.u32 %s865, 4
    %881 = dma.done %s374, %s880
    %s882 = sshll.u32 %s865, 4
    %883 = dma.done %s423, %s882
    %s884 = sshll.u32 %s865, 4
    %885 = dma.done %s472, %s884
    %s886 = sshll.u32 %s865, 4
    %887 = dma.done %s521, %s886
    %s888 = sshll.u32 %s865, 4
    %889 = dma.done %s570, %s888
    %s890 = sshll.u32 %s865, 4
    %891 = dma.done %s619, %s890
    %s892 = sshll.u32 %s865, 4
    %893 = dma.done %s668, %s892
    %s894 = sshll.u32 %s865, 4
    %895 = dma.done %s717, %s894
    %s896 = sshll.u32 %s865, 4
    %897 = dma.done %s766, %s896
    %v898 = vld [vmem:[#allocation2] sm:$0xff]
    %v899 = vld [vmem:[#allocation2 + $0x8] sm:$0xff]
    %v900 = vadd.f32 %v863, %v898
    %v901 = vadd.f32 %v864, %v899
    %vm902 = vcmask 261120
    %v903 = vsel %vm902, %v900, 0.0
    %904 = vadd.xlane.f32.xlu0 %v903
    %v905 = vpop.xlane.xlu0 %904
    %v906 = vsel %vm902, %v901, 0.0
    %907 = vadd.xlane.f32.xlu0 %v906
    %v908 = vpop.xlane.xlu0 %907
    %v909 = vrcp.pop 32.0
    %v910 = vmul.f32 %v905, %v909
    %v911 = vmul.f32 %v908, %v909
    %v912 = vsub.f32 %v900, %v910
    %v913 = vsub.f32 %v901, %v911
    %v914 = vmul.f32 %v912, %v912
    %v915 = vmul.f32 %v913, %v913
    %v916 = vsel %vm902, %v914, 0.0
    %917 = vadd.xlane.f32.xlu0 %v916
    %v918 = vpop.xlane.xlu0 %917
    %v919 = vsel %vm902, %v915, 0.0
    %920 = vadd.xlane.f32.xlu0 %v919
    %v921 = vpop.xlane.xlu0 %920
    %v922 = vmul.f32 %v918, %v909
    %v923 = vmul.f32 %v921, %v909
    %v924 = vadd.f32 %v922, 1e-12
    %v925 = vadd.f32 %v923, 1e-12
    %v926 = vrsqrt.pop %v924
    %v927 = vrsqrt.pop %v925
    %v928 = vmul.f32 %v912, %v926
    %v929 = vmul.f32 %v913, %v927
    %v930 = vld [vmem:[%s4] sm:$0x1]
    %v932 = vlaneseq
    %v933 = vshrl.u32 %v932, 7
    %v934 = vsub.s32 0, %v933
    %v935 = vrot.slane %v930, %v934
    %v937 = vmul.f32 %v935, %v928
    %v938 = vmul.f32 %v935, %v929
    %v939 = vld [vmem:[%s5] sm:$0x1]
    %v941 = vlaneseq
    %v942 = vshrl.u32 %v941, 7
    %v943 = vsub.s32 0, %v942
    %v944 = vrot.slane %v939, %v943
    %v946 = vadd.f32 %v937, %v944
    %v947 = vadd.f32 %v938, %v944
    %948 = vst.msk [vmem:[#allocation6] sm:$0xff] %vm902, %v946
    %949 = vst.msk [vmem:[#allocation6 + $0x8] sm:$0xff] %vm902, %v947
    // Predicated region
    $region502: #{tpu_custom_call.1} parent=1 // pred_check
      _
    $region503: #{tpu_custom_call.1} parent=1 // pred_check_branch
      %951 = sbr.rel (0) target = $region505
    $region504: #{tpu_custom_call.1} parent=1 // pred_region
      %s953 = ssub.s32 256, 256
      %954 = vsyncadd [#allocation7], %s953
      %s955 = sshll.u32 [#allocation6], 4
      %s956 = int_to_ptr.vmem [resolvable:$true] %s955
      %961 = dma.vmem_to_hbm [thread:$0]  %s956, 256, %s7, [#allocation7], 128, 128, 8
    $region505: #{tpu_custom_call.1} parent=1 // pred_fallthru
      _
    // Predicated region
    $region506: #{tpu_custom_call.1} parent=1 // pred_check
      _
    $region507: #{tpu_custom_call.1} parent=1 // pred_check_branch
      %963 = sbr.rel (0) target = $region509
    $region508: #{tpu_custom_call.1} parent=1 // pred_region
      %964 = dma.done [#allocation7], 256
    $region509: #{tpu_custom_call.1} parent=1 // pred_fallthru
      _
    %965 = vsyncpa [#allocation7], 1
  %966 = vsyncmov [#allocation3]
  %s967 = vpop.sfrf %966
  %p968 = scmp.eq.s32.totalorder %s967, 0
  %p969 = pneg %p968
  %971 = shalt.err (%p969)
  %s972 = scalar_lea.sflag [#allocation3], 1
  %973 = vsyncmov %s972
  %s974 = vpop.sfrf %973
  %p975 = scmp.eq.s32.totalorder %s974, 0
  %p976 = pneg %p975
  %978 = shalt.err (%p976)
  %s979 = scalar_lea.sflag [#allocation3], 2
  %980 = vsyncmov %s979
  %s981 = vpop.sfrf %980
  %p982 = scmp.eq.s32.totalorder %s981, 0
  %p983 = pneg %p982
  %985 = shalt.err (%p983)
  %s986 = scalar_lea.sflag [#allocation3], 3
  %987 = vsyncmov %s986
  %s988 = vpop.sfrf %987
  %p989 = scmp.eq.s32.totalorder %s988, 0
  %p990 = pneg %p989
  %992 = shalt.err (%p990)
  %s993 = scalar_lea.sflag [#allocation3], 4
  %994 = vsyncmov %s993
  %s995 = vpop.sfrf %994
  %p996 = scmp.eq.s32.totalorder %s995, 0
  %p997 = pneg %p996
  %999 = shalt.err (%p997)
  %s1000 = scalar_lea.sflag [#allocation3], 5
  %1001 = vsyncmov %s1000
  %s1002 = vpop.sfrf %1001
  %p1003 = scmp.eq.s32.totalorder %s1002, 0
  %p1004 = pneg %p1003
  %1006 = shalt.err (%p1004)
  %s1007 = scalar_lea.sflag [#allocation3], 6
  %1008 = vsyncmov %s1007
  %s1009 = vpop.sfrf %1008
  %p1010 = scmp.eq.s32.totalorder %s1009, 0
  %p1011 = pneg %p1010
  %1013 = shalt.err (%p1011)
  %s1014 = scalar_lea.sflag [#allocation3], 7
  %1015 = vsyncmov %s1014
  %s1016 = vpop.sfrf %1015
  %p1017 = scmp.eq.s32.totalorder %s1016, 0
  %p1018 = pneg %p1017
  %1020 = shalt.err (%p1018)
  %s1021 = scalar_lea.sflag [#allocation3], 8
  %1022 = vsyncmov %s1021
  %s1023 = vpop.sfrf %1022
  %p1024 = scmp.eq.s32.totalorder %s1023, 0
  %p1025 = pneg %p1024
  %1027 = shalt.err (%p1025)
  %s1028 = scalar_lea.sflag [#allocation3], 9
  %1029 = vsyncmov %s1028
  %s1030 = vpop.sfrf %1029
  %p1031 = scmp.eq.s32.totalorder %s1030, 0
  %p1032 = pneg %p1031
  %1034 = shalt.err (%p1032)
  %s1035 = scalar_lea.sflag [#allocation3], 10
  %1036 = vsyncmov %s1035
  %s1037 = vpop.sfrf %1036
  %p1038 = scmp.eq.s32.totalorder %s1037, 0
  %p1039 = pneg %p1038
  %1041 = shalt.err (%p1039)
  %s1042 = scalar_lea.sflag [#allocation3], 11
  %1043 = vsyncmov %s1042
  %s1044 = vpop.sfrf %1043
  %p1045 = scmp.eq.s32.totalorder %s1044, 0
  %p1046 = pneg %p1045
  %1048 = shalt.err (%p1046)
  %s1049 = scalar_lea.sflag [#allocation3], 12
  %1050 = vsyncmov %s1049
  %s1051 = vpop.sfrf %1050
  %p1052 = scmp.eq.s32.totalorder %s1051, 0
  %p1053 = pneg %p1052
  %1055 = shalt.err (%p1053)
  %s1056 = scalar_lea.sflag [#allocation3], 13
  %1057 = vsyncmov %s1056
  %s1058 = vpop.sfrf %1057
  %p1059 = scmp.eq.s32.totalorder %s1058, 0
  %p1060 = pneg %p1059
  %1062 = shalt.err (%p1060)
  %s1063 = scalar_lea.sflag [#allocation3], 14
  %1064 = vsyncmov %s1063
  %s1065 = vpop.sfrf %1064
  %p1066 = scmp.eq.s32.totalorder %s1065, 0
  %p1067 = pneg %p1066
  %1069 = shalt.err (%p1067)
  %s1070 = scalar_lea.sflag [#allocation3], 15
  %1071 = vsyncmov %s1070
  %s1072 = vpop.sfrf %1071
  %p1073 = scmp.eq.s32.totalorder %s1072, 0
  %p1074 = pneg %p1073
  %1076 = shalt.err (%p1074)

</llo_original>
